<compile_context>
chip_gen: v7x
topology: tpu7x:2x2x1
jax: 0.10.0
libtpu: 0.0.40
codegen_flags: <defaults>
</compile_context>

<pallas_src>
import functools

import jax
import jax.numpy as jnp
from jax.experimental import pallas as pl
from jax.experimental.pallas import tpu as pltpu


def _round_up(x, m):
    return ((x + m - 1) // m) * m


@functools.lru_cache(maxsize=1)
def _device_kind():
    try:
        return jax.devices()[0].device_kind.lower()
    except Exception:
        return ""


def _num_tensorcores():
    kind = _device_kind()
    return 2 if ("v7" in kind or "7x" in kind) else 1   # v7x: 2 TCs / chip


def _vmem_ceiling_bytes():
    kind = _device_kind()
    if "v7" in kind or "7x" in kind:
        return 48 * 1024 * 1024      # v7x: 64 MiB physical VMEM per TC
    return 100 * 1024 * 1024         # v5e / v6e: 128 MiB physical VMEM


# ----------------------------- Pallas kernel --------------------------------
def _mlp_fused_kernel(x_ref, w_ref, b_ref, o_ref, *, n_layers):
    # x_ref: (bm, D) bf16 | w_ref: (L, D, D) bf16 | b_ref: (L, 1, D) f32
    # o_ref: (bm, D) f32/bf16.  L is small -> static Python loop (unrolled);
    # intermediate activations never leave vregs/VMEM.
    h = x_ref[...]
    for li in range(n_layers):
        y = jnp.dot(h, w_ref[li], preferred_element_type=jnp.float32)  # MXU, f32 acc
        y = y + b_ref[li]                                              # f32 epilogue
        if li < n_layers - 1:
            h = jnp.tanh(y).astype(x_ref.dtype)    # bf16 for the next MXU pass
        else:
            o_ref[...] = y.astype(o_ref.dtype)     # lane-dense (128-wide) store


# --------------------------- jitted fused forward ----------------------------
@functools.partial(
    jax.jit,
    static_argnames=("layer_sizes", "bm", "single_buffer_weights",
                     "vmem_limit_bytes", "out_dtype"),
)
def _mlp_forward_padded(x, w_stack, b_stack, *, layer_sizes, bm,
                        single_buffer_weights, vmem_limit_bytes, out_dtype):
    B, d_in = x.shape
    n_layers, D, _ = w_stack.shape
    d_out = layer_sizes[-1]

    # Pad batch to a multiple of bm, features to D; feed the MXU bf16.
    B_pad = _round_up(B, bm)
    x_pad = jnp.zeros((B_pad, D), dtype=w_stack.dtype)
    x_pad = x_pad.at[:B, :d_in].set(x.astype(w_stack.dtype))
    grid = (B_pad // bm,)

    # Real (unpadded) cost, advisory for XLA scheduling around the custom call.
    flops = 2 * B * sum(layer_sizes[i] * layer_sizes[i + 1]
                        for i in range(n_layers))
    transcendentals = B * sum(layer_sizes[1:-1])
    w_bytes = sum(layer_sizes[i] * layer_sizes[i + 1]
                  for i in range(n_layers)) * w_stack.dtype.itemsize
    b_bytes = sum(layer_sizes[1:]) * 4
    bytes_accessed = (B * d_in * x.dtype.itemsize + w_bytes + b_bytes
                      + B * d_out * jnp.dtype(out_dtype).itemsize)

    # Weights / biases are grid-invariant -> no need to double-buffer them.
    spec_kwargs = {}
    if single_buffer_weights:
        spec_kwargs["pipeline_mode"] = pl.Buffered(buffer_count=1)

    kernel = functools.partial(_mlp_fused_kernel, n_layers=n_layers)
    out_pad = pl.pallas_call(
        kernel,
        out_shape=jax.ShapeDtypeStruct((B_pad, D), out_dtype),
        grid=grid,
        in_specs=[
            pl.BlockSpec((bm, D), lambda i: (i, 0)),                 # activations
            pl.BlockSpec((n_layers, D, D), lambda i: (0, 0, 0),      # all weights
                         **spec_kwargs),
            pl.BlockSpec((n_layers, 1, D), lambda i: (0, 0, 0),      # all biases
                         **spec_kwargs),
        ],
        out_specs=pl.BlockSpec((bm, D), lambda i: (i, 0)),           # lane-dense
        compiler_params=pltpu.CompilerParams(
            dimension_semantics=("parallel",),
            vmem_limit_bytes=vmem_limit_bytes,
        ),
        cost_estimate=pl.CostEstimate(
            flops=flops,
            transcendentals=transcendentals,
            bytes_accessed=bytes_accessed,
        ),
    )(x_pad, w_stack, b_stack)

    return out_pad[:B, :d_out]


# ------------------------------ MLP wrappers ---------------------------------
def init_mlp_params(key, layer_sizes):
    """Glorot-normal weights (stored pre-transposed (in, out)), zero biases."""
    params = []
    for i in range(1, len(layer_sizes)):
        key, sub = jax.random.split(key)
        fan_in, fan_out = layer_sizes[i - 1], layer_sizes[i]
        std = (2.0 / (fan_in + fan_out)) ** 0.5
        w_t = std * jax.random.normal(sub, (fan_in, fan_out), dtype=jnp.float32)
        b = jnp.zeros((fan_out,), dtype=jnp.float32)
        params.append((w_t, b))
    return params


def prepare_mlp_params(params, mxu_dtype=jnp.bfloat16):
    """One-time packing: stack & zero-pad per-layer weights/biases into a single
    (L, D, D) bf16 / (L, 1, D) f32 VMEM-resident block (D = lane-dense width)."""
    sizes = tuple([params[0][0].shape[0]] + [w.shape[1] for w, _ in params])
    n_layers = len(params)
    D = _round_up(max(sizes), 128)
    w_stack = jnp.zeros((n_layers, D, D), dtype=mxu_dtype)
    b_stack = jnp.zeros((n_layers, 1, D), dtype=jnp.float32)
    for i, (w, b) in enumerate(params):
        di, do = w.shape
        w_stack = w_stack.at[i, :di, :do].set(w.astype(mxu_dtype))
        b_stack = b_stack.at[i, 0, :do].set(b.astype(jnp.float32))
    return {
        "w_stack": jax.device_put(w_stack),
        "b_stack": jax.device_put(b_stack),
        "layer_sizes": sizes,
    }


_SINGLE_BUFFER_OK = True   # flipped off if this JAX build rejects pl.Buffered(1)


def mlp_forward(packed, x, *, out_dtype=jnp.float32, bm_cap=256):
    """Fused MLP: tanh(linear(x)) for all but the last layer; last layer linear.
    `out_dtype=jnp.bfloat16` halves the HBM writeback if the caller allows it."""
    global _SINGLE_BUFFER_OK
    w_stack = packed["w_stack"]
    b_stack = packed["b_stack"]
    layer_sizes = packed["layer_sizes"]

    B = x.shape[0]
    n_layers, D, _ = w_stack.shape

    # One grid step per TensorCore (1 on v5e/v6e, 2 on v7x); bm multiple of 16,
    # capped at 256 to keep the per-layer f32 intermediate within the vreg file.
    num_tc = _num_tensorcores()
    bm = min(bm_cap, _round_up(-(-B // num_tc), 16))

    # VMEM budget: resident weight/bias stack (worst case double-buffered) plus
    # double-buffered activation/output tiles, clamped per generation.
    resident = (2 * n_layers * D * D * w_stack.dtype.itemsize
                + 2 * n_layers * D * 4)
    tiles = 2 * bm * D * (w_stack.dtype.itemsize + jnp.dtype(out_dtype).itemsize)
    vmem_limit = int(min(_vmem_ceiling_bytes(),
                         max(16 * 1024 * 1024,
                             _round_up(resident + tiles + (4 << 20), 1 << 20))))

    modes = (True, False) if _SINGLE_BUFFER_OK else (False,)
    last_err = None
    for single_buffer in modes:
        try:
            return _mlp_forward_padded(
                x, w_stack, b_stack,
                layer_sizes=layer_sizes, bm=bm,
                single_buffer_weights=single_buffer,
                vmem_limit_bytes=vmem_limit,
                out_dtype=out_dtype)
        except Exception as e:   # version-dependent pipeline_mode fallback
            last_err = e
            if single_buffer:
                _SINGLE_BUFFER_OK = False
                continue
            raise
    raise last_err


# ------------------------- Pure-JAX references -------------------------------
def mlp_forward_ref(params, x, mxu_dtype=jnp.float32):
    n = len(params)
    h = x.astype(jnp.float32)
    for i, (w, b) in enumerate(params):
        y = jnp.dot(h.astype(mxu_dtype), w.astype(mxu_dtype),
                    preferred_element_type=jnp.float32) + b
        h = jnp.tanh(y) if i < n - 1 else y
    return h


if __name__ == "__main__":
    layer_sizes = [16, 32, 32, 8]   # small DeepONet-style MLP
    batch = 256                     # 1 grid step on v5e/v6e, 2 parallel on v7x

    key = jax.random.PRNGKey(0)
    key, kx = jax.random.split(key)
    x = jax.random.normal(kx, (batch, layer_sizes[0]), dtype=jnp.float32)
    params = init_mlp_params(key, layer_sizes)

    packed = prepare_mlp_params(params)          # one-time stacking / padding

    out = mlp_forward(packed, x)                 # first call: trace + compile
    out = jax.block_until_ready(out)
    assert out.shape == (batch, layer_sizes[-1])

    out2 = jax.block_until_ready(mlp_forward(packed, x))   # cached jit path
    assert jnp.allclose(out, out2)

    # Matched-precision reference (same bf16 MXU casts) -- tight tolerance.
    ref_bf16 = mlp_forward_ref(params, x, mxu_dtype=jnp.bfloat16)
    assert jnp.allclose(out, ref_bf16, atol=1e-2, rtol=1e-2), float(
        jnp.max(jnp.abs(out - ref_bf16)))

    # Full-f32 semantic reference (PyTorch module math) -- bf16-level tolerance.
    ref_f32 = mlp_forward_ref(params, x, mxu_dtype=jnp.float32)
    assert jnp.allclose(out, ref_f32, atol=5e-2, rtol=5e-2), float(
        jnp.max(jnp.abs(out - ref_f32)))

    print("KERNEL_OK")
</pallas_src>

<mosaic_0001>
module attributes {stable_mosaic.version = 11 : i64} {
  func.func @_mlp_fused_kernel(%arg0: i32, %arg1: memref<256x128xbf16, #tpu.memory_space<vmem>>, %arg2: memref<3x128x128xbf16, #tpu.memory_space<vmem>>, %arg3: memref<3x1x128xf32, #tpu.memory_space<vmem>>, %arg4: memref<256x128xf32, #tpu.memory_space<vmem>>) attributes {dimension_semantics = [#tpu.dimension_semantics<parallel>], iteration_bounds = array<i64: 1>, scalar_prefetch = 0 : i64, scratch_operands = 0 : i64, tpu.core_type = #tpu.core_type<tc>, window_params = [{transform_indices = @transform_0, window_bounds = array<i64: 256, 128>}, {pipeline_mode = #tpu.pipeline_mode<synchronous>, transform_indices = @transform_1, window_bounds = array<i64: 3, 128, 128>}, {pipeline_mode = #tpu.pipeline_mode<synchronous>, transform_indices = @transform_2, window_bounds = array<i64: 3, 1, 128>}, {transform_indices = @transform_3, window_bounds = array<i64: 256, 128>}]} {
    %c0 = arith.constant 0 : index
    %c0_0 = arith.constant 0 : index
    %0 = vector.load %arg1[%c0, %c0_0] : memref<256x128xbf16, #tpu.memory_space<vmem>>, vector<256x128xbf16>
    %c0_1 = arith.constant 0 : index
    %c0_2 = arith.constant 0 : index
    %c0_3 = arith.constant 0 : index
    %1 = vector.load %arg2[%c0_1, %c0_2, %c0_3] : memref<3x128x128xbf16, #tpu.memory_space<vmem>>, vector<1x128x128xbf16>
    %2 = vector.shape_cast %1 : vector<1x128x128xbf16> to vector<128x128xbf16>
    %cst = arith.constant dense<0.000000e+00> : vector<256x128xf32>
    %3 = tpu.matmul %0, %2, %cst {dimension_numbers = #tpu.dot_dimension_numbers<[1], [0], [0], [1], [0, 0, 1, 1], [], []>} : vector<256x128xbf16>, vector<128x128xbf16>, vector<256x128xf32> -> vector<256x128xf32>
    %c0_4 = arith.constant 0 : index
    %c0_5 = arith.constant 0 : index
    %c0_6 = arith.constant 0 : index
    %4 = vector.load %arg3[%c0_4, %c0_5, %c0_6] : memref<3x1x128xf32, #tpu.memory_space<vmem>>, vector<1x1x128xf32>
    %5 = vector.shape_cast %4 : vector<1x1x128xf32> to vector<1x128xf32>
    %6 = vector.broadcast %5 : vector<1x128xf32> to vector<256x128xf32>
    %7 = arith.addf %3, %6 : vector<256x128xf32>
    %8 = math.tanh %7 : vector<256x128xf32>
    %9 = arith.truncf %8 : vector<256x128xf32> to vector<256x128xbf16>
    %c1 = arith.constant 1 : index
    %c0_7 = arith.constant 0 : index
    %c0_8 = arith.constant 0 : index
    %10 = vector.load %arg2[%c1, %c0_7, %c0_8] : memref<3x128x128xbf16, #tpu.memory_space<vmem>>, vector<1x128x128xbf16>
    %11 = vector.shape_cast %10 : vector<1x128x128xbf16> to vector<128x128xbf16>
    %cst_9 = arith.constant dense<0.000000e+00> : vector<256x128xf32>
    %12 = tpu.matmul %9, %11, %cst_9 {dimension_numbers = #tpu.dot_dimension_numbers<[1], [0], [0], [1], [0, 0, 1, 1], [], []>} : vector<256x128xbf16>, vector<128x128xbf16>, vector<256x128xf32> -> vector<256x128xf32>
    %c1_10 = arith.constant 1 : index
    %c0_11 = arith.constant 0 : index
    %c0_12 = arith.constant 0 : index
    %13 = vector.load %arg3[%c1_10, %c0_11, %c0_12] : memref<3x1x128xf32, #tpu.memory_space<vmem>>, vector<1x1x128xf32>
    %14 = vector.shape_cast %13 : vector<1x1x128xf32> to vector<1x128xf32>
    %15 = vector.broadcast %14 : vector<1x128xf32> to vector<256x128xf32>
    %16 = arith.addf %12, %15 : vector<256x128xf32>
    %17 = math.tanh %16 : vector<256x128xf32>
    %18 = arith.truncf %17 : vector<256x128xf32> to vector<256x128xbf16>
    %c2 = arith.constant 2 : index
    %c0_13 = arith.constant 0 : index
    %c0_14 = arith.constant 0 : index
    %19 = vector.load %arg2[%c2, %c0_13, %c0_14] : memref<3x128x128xbf16, #tpu.memory_space<vmem>>, vector<1x128x128xbf16>
    %20 = vector.shape_cast %19 : vector<1x128x128xbf16> to vector<128x128xbf16>
    %cst_15 = arith.constant dense<0.000000e+00> : vector<256x128xf32>
    %21 = tpu.matmul %18, %20, %cst_15 {dimension_numbers = #tpu.dot_dimension_numbers<[1], [0], [0], [1], [0, 0, 1, 1], [], []>} : vector<256x128xbf16>, vector<128x128xbf16>, vector<256x128xf32> -> vector<256x128xf32>
    %c2_16 = arith.constant 2 : index
    %c0_17 = arith.constant 0 : index
    %c0_18 = arith.constant 0 : index
    %22 = vector.load %arg3[%c2_16, %c0_17, %c0_18] : memref<3x1x128xf32, #tpu.memory_space<vmem>>, vector<1x1x128xf32>
    %23 = vector.shape_cast %22 : vector<1x1x128xf32> to vector<1x128xf32>
    %24 = vector.broadcast %23 : vector<1x128xf32> to vector<256x128xf32>
    %25 = arith.addf %21, %24 : vector<256x128xf32>
    %c0_19 = arith.constant 0 : index
    %c0_20 = arith.constant 0 : index
    %26 = vector.load %arg4[%c0_19, %c0_20] : memref<256x128xf32, #tpu.memory_space<vmem>>, vector<256x128xf32>
    tpu.vector_store %arg4[%c0_19, %c0_20], %25 {strides = array<i32>} : memref<256x128xf32, #tpu.memory_space<vmem>>, vector<256x128xf32>,
    return
  }
  func.func @transform_0(%arg0: i32) -> (i32, i32) {
    %c0_i32 = arith.constant 0 : i32
    %c0_i32_0 = arith.constant 0 : i32
    return %arg0, %c0_i32 : i32, i32
  }
  func.func @transform_1(%arg0: i32) -> (i32, i32, i32) {
    %c0_i32 = arith.constant 0 : i32
    %c0_i32_0 = arith.constant 0 : i32
    %c0_i32_1 = arith.constant 0 : i32
    %c0_i32_2 = arith.constant 0 : i32
    return %c0_i32, %c0_i32_0, %c0_i32_1 : i32, i32, i32
  }
  func.func @transform_2(%arg0: i32) -> (i32, i32, i32) {
    %c0_i32 = arith.constant 0 : i32
    %c0_i32_0 = arith.constant 0 : i32
    %c0_i32_1 = arith.constant 0 : i32
    %c0_i32_2 = arith.constant 0 : i32
    return %c0_i32, %c0_i32_0, %c0_i32_1 : i32, i32, i32
  }
  func.func @transform_3(%arg0: i32) -> (i32, i32) {
    %c0_i32 = arith.constant 0 : i32
    %c0_i32_0 = arith.constant 0 : i32
    return %arg0, %c0_i32 : i32, i32
  }
}

module attributes {stable_mosaic.version = 11 : i64} {
  func.func @_mlp_fused_kernel(%arg0: i32, %arg1: memref<256x128xbf16, #tpu.memory_space<vmem>>, %arg2: memref<3x128x128xbf16, #tpu.memory_space<vmem>>, %arg3: memref<3x1x128xf32, #tpu.memory_space<vmem>>, %arg4: memref<256x128xf32, #tpu.memory_space<vmem>>) attributes {dimension_semantics = [#tpu.dimension_semantics<parallel>], iteration_bounds = array<i64: 1>, scalar_prefetch = 0 : i64, scratch_operands = 0 : i64, tpu.core_type = #tpu.core_type<tc>, window_params = [{transform_indices = @transform_0, window_bounds = array<i64: 256, 128>}, {pipeline_mode = #tpu.pipeline_mode<synchronous>, transform_indices = @transform_1, window_bounds = array<i64: 3, 128, 128>}, {pipeline_mode = #tpu.pipeline_mode<synchronous>, transform_indices = @transform_2, window_bounds = array<i64: 3, 1, 128>}, {transform_indices = @transform_3, window_bounds = array<i64: 256, 128>}]} {
    %c0 = arith.constant 0 : index
    %c0_0 = arith.constant 0 : index
    %0 = vector.load %arg1[%c0, %c0_0] : memref<256x128xbf16, #tpu.memory_space<vmem>>, vector<256x128xbf16>
    %c0_1 = arith.constant 0 : index
    %c0_2 = arith.constant 0 : index
    %c0_3 = arith.constant 0 : index
    %1 = vector.load %arg2[%c0_1, %c0_2, %c0_3] : memref<3x128x128xbf16, #tpu.memory_space<vmem>>, vector<1x128x128xbf16>
    %2 = vector.shape_cast %1 : vector<1x128x128xbf16> to vector<128x128xbf16>
    %cst = arith.constant dense<0.000000e+00> : vector<256x128xf32>
    %3 = tpu.matmul %0, %2, %cst {dimension_numbers = #tpu.dot_dimension_numbers<[1], [0], [0], [1], [0, 0, 1, 1], [], []>} : vector<256x128xbf16>, vector<128x128xbf16>, vector<256x128xf32> -> vector<256x128xf32>
    %c0_4 = arith.constant 0 : index
    %c0_5 = arith.constant 0 : index
    %c0_6 = arith.constant 0 : index
    %4 = vector.load %arg3[%c0_4, %c0_5, %c0_6] : memref<3x1x128xf32, #tpu.memory_space<vmem>>, vector<1x1x128xf32>
    %5 = vector.shape_cast %4 : vector<1x1x128xf32> to vector<1x128xf32>
    %6 = vector.broadcast %5 : vector<1x128xf32> to vector<256x128xf32>
    %7 = arith.addf %3, %6 : vector<256x128xf32>
    %8 = math.tanh %7 : vector<256x128xf32>
    %9 = arith.truncf %8 : vector<256x128xf32> to vector<256x128xbf16>
    %c1 = arith.constant 1 : index
    %c0_7 = arith.constant 0 : index
    %c0_8 = arith.constant 0 : index
    %10 = vector.load %arg2[%c1, %c0_7, %c0_8] : memref<3x128x128xbf16, #tpu.memory_space<vmem>>, vector<1x128x128xbf16>
    %11 = vector.shape_cast %10 : vector<1x128x128xbf16> to vector<128x128xbf16>
    %cst_9 = arith.constant dense<0.000000e+00> : vector<256x128xf32>
    %12 = tpu.matmul %9, %11, %cst_9 {dimension_numbers = #tpu.dot_dimension_numbers<[1], [0], [0], [1], [0, 0, 1, 1], [], []>} : vector<256x128xbf16>, vector<128x128xbf16>, vector<256x128xf32> -> vector<256x128xf32>
    %c1_10 = arith.constant 1 : index
    %c0_11 = arith.constant 0 : index
    %c0_12 = arith.constant 0 : index
    %13 = vector.load %arg3[%c1_10, %c0_11, %c0_12] : memref<3x1x128xf32, #tpu.memory_space<vmem>>, vector<1x1x128xf32>
    %14 = vector.shape_cast %13 : vector<1x1x128xf32> to vector<1x128xf32>
    %15 = vector.broadcast %14 : vector<1x128xf32> to vector<256x128xf32>
    %16 = arith.addf %12, %15 : vector<256x128xf32>
    %17 = math.tanh %16 : vector<256x128xf32>
    %18 = arith.truncf %17 : vector<256x128xf32> to vector<256x128xbf16>
    %c2 = arith.constant 2 : index
    %c0_13 = arith.constant 0 : index
    %c0_14 = arith.constant 0 : index
    %19 = vector.load %arg2[%c2, %c0_13, %c0_14] : memref<3x128x128xbf16, #tpu.memory_space<vmem>>, vector<1x128x128xbf16>
    %20 = vector.shape_cast %19 : vector<1x128x128xbf16> to vector<128x128xbf16>
    %cst_15 = arith.constant dense<0.000000e+00> : vector<256x128xf32>
    %21 = tpu.matmul %18, %20, %cst_15 {dimension_numbers = #tpu.dot_dimension_numbers<[1], [0], [0], [1], [0, 0, 1, 1], [], []>} : vector<256x128xbf16>, vector<128x128xbf16>, vector<256x128xf32> -> vector<256x128xf32>
    %c2_16 = arith.constant 2 : index
    %c0_17 = arith.constant 0 : index
    %c0_18 = arith.constant 0 : index
    %22 = vector.load %arg3[%c2_16, %c0_17, %c0_18] : memref<3x1x128xf32, #tpu.memory_space<vmem>>, vector<1x1x128xf32>
    %23 = vector.shape_cast %22 : vector<1x1x128xf32> to vector<1x128xf32>
    %24 = vector.broadcast %23 : vector<1x128xf32> to vector<256x128xf32>
    %25 = arith.addf %21, %24 : vector<256x128xf32>
    %c0_19 = arith.constant 0 : index
    %c0_20 = arith.constant 0 : index
    %26 = vector.load %arg4[%c0_19, %c0_20] : memref<256x128xf32, #tpu.memory_space<vmem>>, vector<256x128xf32>
    tpu.vector_store %arg4[%c0_19, %c0_20], %25 {strides = array<i32>} : memref<256x128xf32, #tpu.memory_space<vmem>>, vector<256x128xf32>,
    return
  }
  func.func @transform_0(%arg0: i32) -> (i32, i32) {
    %c0_i32 = arith.constant 0 : i32
    %c0_i32_0 = arith.constant 0 : i32
    return %arg0, %c0_i32 : i32, i32
  }
  func.func @transform_1(%arg0: i32) -> (i32, i32, i32) {
    %c0_i32 = arith.constant 0 : i32
    %c0_i32_0 = arith.constant 0 : i32
    %c0_i32_1 = arith.constant 0 : i32
    %c0_i32_2 = arith.constant 0 : i32
    return %c0_i32, %c0_i32_0, %c0_i32_1 : i32, i32, i32
  }
  func.func @transform_2(%arg0: i32) -> (i32, i32, i32) {
    %c0_i32 = arith.constant 0 : i32
    %c0_i32_0 = arith.constant 0 : i32
    %c0_i32_1 = arith.constant 0 : i32
    %c0_i32_2 = arith.constant 0 : i32
    return %c0_i32, %c0_i32_0, %c0_i32_1 : i32, i32, i32
  }
  func.func @transform_3(%arg0: i32) -> (i32, i32) {
    %c0_i32 = arith.constant 0 : i32
    %c0_i32_0 = arith.constant 0 : i32
    return %arg0, %c0_i32 : i32, i32
  }
}

</mosaic_0001>

<llo_original>
// kernel: _mlp_forward_padded.1
$region0: #{_mlp_forward_padded.1}
  #allocation0 [shape = 'u32[]', space=smem, size = 0x4, offset = 0x4, fixed_abs, tag = 'smem constant byte address 0x4 - core index']
  #allocation1 [shape = 'u32[144,128]{1,0:T(1,128)}', space=vmem, size = 0x12000, scoped, tag = 'internal scratch']
  %s0 = inlined_call_operand.vmem [shape: bf16[256,128], index: 0, kind: input, shape index: {}]
  %s1 = inlined_call_operand.vmem [shape: bf16[3,128,128], index: 1, kind: input, shape index: {}]
  %s2 = inlined_call_operand.vmem [shape: f32[3,1,128], index: 2, kind: input, shape index: {}]
  %s3 = inlined_call_operand.vmem [shape: f32[256,128], index: 3, kind: output, shape index: {}]
  %s4 = sld [smem:[#allocation0]]
  $region22: #{_mlp_forward_padded.1} parent=0
    _
  %s6 = ssub.s32 1, %s4
  %s7 = scalar_select 0, %s6, %s4
  // Predicated region
  $region2: #{_mlp_forward_padded.1} parent=0 // pred_check
    _
  $region3: #{_mlp_forward_padded.1} parent=0 // pred_check_branch
    %9 = sbr.rel (0) target = $region5
  $region4: #{_mlp_forward_padded.1} parent=0 // pred_region
    _
  $region5: #{_mlp_forward_padded.1} parent=0 // pred_fallthru
    _
  // Predicated region
  $region6: #{_mlp_forward_padded.1} parent=0 // pred_check
    _
  $region7: #{_mlp_forward_padded.1} parent=0 // pred_check_branch
    %11 = sbr.rel (0) target = $region9
  $region8: #{_mlp_forward_padded.1} parent=0 // pred_region
    _
  $region9: #{_mlp_forward_padded.1} parent=0 // pred_fallthru
    _
  // Predicated region
  $region10: #{_mlp_forward_padded.1} parent=0 // pred_check
    _
  $region11: #{_mlp_forward_padded.1} parent=0 // pred_check_branch
    %13 = sbr.rel (0) target = $region13
  $region12: #{_mlp_forward_padded.1} parent=0 // pred_region
    _
  $region13: #{_mlp_forward_padded.1} parent=0 // pred_fallthru
    _
  %v15 = vld [vmem:[%s0] sm:$0xf]
  %v16 = vld [vmem:[%s0 + $0x4] sm:$0xf]
  %v17 = vld [vmem:[%s0 + $0x8] sm:$0xf]
  %v18 = vld [vmem:[%s0 + $0xc] sm:$0xf]
  %v19 = vld [vmem:[%s0 + $0x10] sm:$0xf]
  %v20 = vld [vmem:[%s0 + $0x14] sm:$0xf]
  %v21 = vld [vmem:[%s0 + $0x18] sm:$0xf]
  %v22 = vld [vmem:[%s0 + $0x1c] sm:$0xf]
  %v23 = vld [vmem:[%s0 + $0x20] sm:$0xf]
  %v24 = vld [vmem:[%s0 + $0x24] sm:$0xf]
  %v25 = vld [vmem:[%s0 + $0x28] sm:$0xf]
  %v26 = vld [vmem:[%s0 + $0x2c] sm:$0xf]
  %v27 = vld [vmem:[%s0 + $0x30] sm:$0xf]
  %v28 = vld [vmem:[%s0 + $0x34] sm:$0xf]
  %v29 = vld [vmem:[%s0 + $0x38] sm:$0xf]
  %v30 = vld [vmem:[%s0 + $0x3c] sm:$0xf]
  %v31 = vld [vmem:[%s0 + $0x40] sm:$0xf]
  %v32 = vld [vmem:[%s0 + $0x44] sm:$0xf]
  %v33 = vld [vmem:[%s0 + $0x48] sm:$0xf]
  %v34 = vld [vmem:[%s0 + $0x4c] sm:$0xf]
  %v35 = vld [vmem:[%s0 + $0x50] sm:$0xf]
  %v36 = vld [vmem:[%s0 + $0x54] sm:$0xf]
  %v37 = vld [vmem:[%s0 + $0x58] sm:$0xf]
  %v38 = vld [vmem:[%s0 + $0x5c] sm:$0xf]
  %v39 = vld [vmem:[%s0 + $0x60] sm:$0xf]
  %v40 = vld [vmem:[%s0 + $0x64] sm:$0xf]
  %v41 = vld [vmem:[%s0 + $0x68] sm:$0xf]
  %v42 = vld [vmem:[%s0 + $0x6c] sm:$0xf]
  %v43 = vld [vmem:[%s0 + $0x70] sm:$0xf]
  %v44 = vld [vmem:[%s0 + $0x74] sm:$0xf]
  %v45 = vld [vmem:[%s0 + $0x78] sm:$0xf]
  %v46 = vld [vmem:[%s0 + $0x7c] sm:$0xf]
  %v47 = vld [vmem:[%s1] sm:$0xf]
  %v48 = vld [vmem:[%s1 + $0x4] sm:$0xf]
  %v49 = vld [vmem:[%s1 + $0x8] sm:$0xf]
  %v50 = vld [vmem:[%s1 + $0xc] sm:$0xf]
  %v51 = vld [vmem:[%s1 + $0x10] sm:$0xf]
  %v52 = vld [vmem:[%s1 + $0x14] sm:$0xf]
  %v53 = vld [vmem:[%s1 + $0x18] sm:$0xf]
  %v54 = vld [vmem:[%s1 + $0x1c] sm:$0xf]
  %v55 = vld [vmem:[%s1 + $0x20] sm:$0xf]
  %v56 = vld [vmem:[%s1 + $0x24] sm:$0xf]
  %v57 = vld [vmem:[%s1 + $0x28] sm:$0xf]
  %v58 = vld [vmem:[%s1 + $0x2c] sm:$0xf]
  %v59 = vld [vmem:[%s1 + $0x30] sm:$0xf]
  %v60 = vld [vmem:[%s1 + $0x34] sm:$0xf]
  %v61 = vld [vmem:[%s1 + $0x38] sm:$0xf]
  %v62 = vld [vmem:[%s1 + $0x3c] sm:$0xf]
  %v63 = vld [vmem:[%s2] sm:$0x1]
  %v65 = vlaneseq
  %v66 = vshrl.u32 %v65, 7
  %v67 = vsub.s32 0, %v66
  %v68 = vrot.slane %v63, %v67
  %v102 = vunpack.c.l.b16 %v15
  %v103 = vunpack.c.l.b16 %v16
  %v104 = vunpack.c.l.b16 %v17
  %v105 = vunpack.c.l.b16 %v18
  %v106 = vunpack.c.l.b16 %v19
  %v107 = vunpack.c.l.b16 %v20
  %v108 = vunpack.c.l.b16 %v21
  %v109 = vunpack.c.l.b16 %v22
  %v110 = vunpack.c.l.b16 %v23
  %v111 = vunpack.c.l.b16 %v24
  %v112 = vunpack.c.l.b16 %v25
  %v113 = vunpack.c.l.b16 %v26
  %v114 = vunpack.c.l.b16 %v27
  %v115 = vunpack.c.l.b16 %v28
  %v116 = vunpack.c.l.b16 %v29
  %v117 = vunpack.c.l.b16 %v30
  %v118 = vunpack.c.l.b16 %v31
  %v119 = vunpack.c.l.b16 %v32
  %v120 = vunpack.c.l.b16 %v33
  %v121 = vunpack.c.l.b16 %v34
  %v122 = vunpack.c.l.b16 %v35
  %v123 = vunpack.c.l.b16 %v36
  %v124 = vunpack.c.l.b16 %v37
  %v125 = vunpack.c.l.b16 %v38
  %v126 = vunpack.c.l.b16 %v39
  %v127 = vunpack.c.l.b16 %v40
  %v128 = vunpack.c.l.b16 %v41
  %v129 = vunpack.c.l.b16 %v42
  %v130 = vunpack.c.l.b16 %v43
  %v131 = vunpack.c.l.b16 %v44
  %v132 = vunpack.c.l.b16 %v45
  %v133 = vunpack.c.l.b16 %v46
  %v134 = vpack.c.b16 %v103, %v102
  %v135 = vpack.c.b16 %v105, %v104
  %v136 = vpack.c.b16 %v107, %v106
  %v137 = vpack.c.b16 %v109, %v108
  %v138 = vpack.c.b16 %v111, %v110
  %v139 = vpack.c.b16 %v113, %v112
  %v140 = vpack.c.b16 %v115, %v114
  %v141 = vpack.c.b16 %v117, %v116
  %v142 = vpack.c.b16 %v119, %v118
  %v143 = vpack.c.b16 %v121, %v120
  %v144 = vpack.c.b16 %v123, %v122
  %v145 = vpack.c.b16 %v125, %v124
  %v146 = vpack.c.b16 %v127, %v126
  %v147 = vpack.c.b16 %v129, %v128
  %v148 = vpack.c.b16 %v131, %v130
  %v149 = vpack.c.b16 %v133, %v132
  %v182 = vunpack.c.l.b16 %v47
  %v183 = vunpack.c.l.b16 %v48
  %v184 = vunpack.c.l.b16 %v49
  %v185 = vunpack.c.l.b16 %v50
  %v186 = vunpack.c.l.b16 %v51
  %v187 = vunpack.c.l.b16 %v52
  %v188 = vunpack.c.l.b16 %v53
  %v189 = vunpack.c.l.b16 %v54
  %v190 = vunpack.c.l.b16 %v55
  %v191 = vunpack.c.l.b16 %v56
  %v192 = vunpack.c.l.b16 %v57
  %v193 = vunpack.c.l.b16 %v58
  %v194 = vunpack.c.l.b16 %v59
  %v195 = vunpack.c.l.b16 %v60
  %v196 = vunpack.c.l.b16 %v61
  %v197 = vunpack.c.l.b16 %v62
  %v198 = vpack.c.b16 %v183, %v182
  %v199 = vpack.c.b16 %v185, %v184
  %v200 = vpack.c.b16 %v187, %v186
  %v201 = vpack.c.b16 %v189, %v188
  %v202 = vpack.c.b16 %v191, %v190
  %v203 = vpack.c.b16 %v193, %v192
  %v204 = vpack.c.b16 %v195, %v194
  %v205 = vpack.c.b16 %v197, %v196
  %214 = vmatprep.subr.bf16.mxu0 0
  %215 = vmatpush1.bf16.msra.mxu0 %v198
  %216 = vmatprep.subr.bf16.mxu0 0
  %217 = vmatpush1.bf16.msra.mxu0 %v199
  %218 = vmatprep.subr.bf16.mxu0 0
  %219 = vmatpush1.bf16.msra.mxu0 %v200
  %220 = vmatprep.subr.bf16.mxu0 0
  %221 = vmatpush1.bf16.msra.mxu0 %v201
  %222 = vmatprep.subr.bf16.mxu0 0
  %223 = vmatpush1.bf16.msra.mxu0 %v202
  %224 = vmatprep.subr.bf16.mxu0 0
  %225 = vmatpush1.bf16.msra.mxu0 %v203
  %226 = vmatprep.subr.bf16.mxu0 0
  %227 = vmatpush1.bf16.msra.mxu0 %v204
  %228 = vmatprep.subr.bf16.mxu0 0
  %229 = vmatpush1.bf16.msra.mxu0 %v205
  %230 = vmatprep.subr.bf16.mxu0 0
  %231 = vmatpush1.bf16.msra.mxu0 0
  %232 = vmatprep.subr.bf16.mxu0 0
  %233 = vmatpush1.bf16.msra.mxu0 0
  %234 = vmatprep.subr.bf16.mxu0 0
  %235 = vmatpush1.bf16.msra.mxu0 0
  %236 = vmatprep.subr.bf16.mxu0 0
  %237 = vmatpush1.bf16.msra.mxu0 0
  %238 = vmatprep.subr.bf16.mxu0 0
  %239 = vmatpush1.bf16.msra.mxu0 0
  %240 = vmatprep.subr.bf16.mxu0 0
  %241 = vmatpush1.bf16.msra.mxu0 0
  %242 = vmatprep.subr.bf16.mxu0 0
  %243 = vmatpush1.bf16.msra.mxu0 0
  %244 = vmatprep.subr.bf16.mxu0 0
  %245 = vmatpush1.bf16.msra.mxu0 0
  %246 = vmatprep.mubr.bf16.mxu0 0
  %247 = vmatmul.mubr.bf16.gmra.mrb[0].mxu0 %v134
  %v248 = vpop.f32.mrb[0].mxu0
  %v249 = vadd.f32 %v68, %v248
  %v250 = vpop.f32.mrb[0].mxu0
  %v251 = vpop.f32.mrb[0].mxu0
  %v252 = vadd.f32 %v68, %v251
  %v253 = vpop.f32.mrb[0].mxu0
  %254 = vmatprep.mubr.bf16.mxu0 0
  %255 = vmatmul.mubr.bf16.gmra.mrb[0].mxu0 %v135
  %v256 = vpop.f32.mrb[0].mxu0
  %v257 = vadd.f32 %v68, %v256
  %v258 = vpop.f32.mrb[0].mxu0
  %v259 = vpop.f32.mrb[0].mxu0
  %v260 = vadd.f32 %v68, %v259
  %v261 = vpop.f32.mrb[0].mxu0
  %262 = vmatprep.mubr.bf16.mxu0 0
  %263 = vmatmul.mubr.bf16.gmra.mrb[0].mxu0 %v136
  %v264 = vpop.f32.mrb[0].mxu0
  %v265 = vadd.f32 %v68, %v264
  %v266 = vpop.f32.mrb[0].mxu0
  %v267 = vpop.f32.mrb[0].mxu0
  %v268 = vadd.f32 %v68, %v267
  %v269 = vpop.f32.mrb[0].mxu0
  %270 = vmatprep.mubr.bf16.mxu0 0
  %271 = vmatmul.mubr.bf16.gmra.mrb[0].mxu0 %v137
  %v272 = vpop.f32.mrb[0].mxu0
  %v273 = vadd.f32 %v68, %v272
  %v274 = vpop.f32.mrb[0].mxu0
  %v275 = vpop.f32.mrb[0].mxu0
  %v276 = vadd.f32 %v68, %v275
  %v277 = vpop.f32.mrb[0].mxu0
  %278 = vmatprep.mubr.bf16.mxu0 0
  %279 = vmatmul.mubr.bf16.gmra.mrb[0].mxu0 %v138
  %v280 = vpop.f32.mrb[0].mxu0
  %v281 = vadd.f32 %v68, %v280
  %v282 = vpop.f32.mrb[0].mxu0
  %v283 = vpop.f32.mrb[0].mxu0
  %v284 = vadd.f32 %v68, %v283
  %v285 = vpop.f32.mrb[0].mxu0
  %286 = vmatprep.mubr.bf16.mxu0 0
  %287 = vmatmul.mubr.bf16.gmra.mrb[0].mxu0 %v139
  %v288 = vpop.f32.mrb[0].mxu0
  %v289 = vadd.f32 %v68, %v288
  %v290 = vpop.f32.mrb[0].mxu0
  %v291 = vpop.f32.mrb[0].mxu0
  %v292 = vadd.f32 %v68, %v291
  %v293 = vpop.f32.mrb[0].mxu0
  %294 = vmatprep.mubr.bf16.mxu0 0
  %295 = vmatmul.mubr.bf16.gmra.mrb[0].mxu0 %v140
  %v296 = vpop.f32.mrb[0].mxu0
  %v297 = vadd.f32 %v68, %v296
  %v298 = vpop.f32.mrb[0].mxu0
  %v299 = vpop.f32.mrb[0].mxu0
  %v300 = vadd.f32 %v68, %v299
  %v301 = vpop.f32.mrb[0].mxu0
  %302 = vmatprep.mubr.bf16.mxu0 0
  %303 = vmatmul.mubr.bf16.gmra.mrb[0].mxu0 %v141
  %v304 = vpop.f32.mrb[0].mxu0
  %v305 = vadd.f32 %v68, %v304
  %v306 = vpop.f32.mrb[0].mxu0
  %v307 = vpop.f32.mrb[0].mxu0
  %v308 = vadd.f32 %v68, %v307
  %v309 = vpop.f32.mrb[0].mxu0
  %310 = vmatprep.mubr.bf16.mxu0 0
  %311 = vmatmul.mubr.bf16.gmra.mrb[0].mxu0 %v142
  %v312 = vpop.f32.mrb[0].mxu0
  %v313 = vadd.f32 %v68, %v312
  %v314 = vpop.f32.mrb[0].mxu0
  %v315 = vpop.f32.mrb[0].mxu0
  %v316 = vadd.f32 %v68, %v315
  %v317 = vpop.f32.mrb[0].mxu0
  %318 = vmatprep.mubr.bf16.mxu0 0
  %319 = vmatmul.mubr.bf16.gmra.mrb[0].mxu0 %v143
  %v320 = vpop.f32.mrb[0].mxu0
  %v321 = vadd.f32 %v68, %v320
  %v322 = vpop.f32.mrb[0].mxu0
  %v323 = vpop.f32.mrb[0].mxu0
  %v324 = vadd.f32 %v68, %v323
  %v325 = vpop.f32.mrb[0].mxu0
  %326 = vmatprep.mubr.bf16.mxu0 0
  %327 = vmatmul.mubr.bf16.gmra.mrb[0].mxu0 %v144
  %v328 = vpop.f32.mrb[0].mxu0
  %v329 = vadd.f32 %v68, %v328
  %v330 = vpop.f32.mrb[0].mxu0
  %v331 = vpop.f32.mrb[0].mxu0
  %v332 = vadd.f32 %v68, %v331
  %v333 = vpop.f32.mrb[0].mxu0
  %334 = vmatprep.mubr.bf16.mxu0 0
  %335 = vmatmul.mubr.bf16.gmra.mrb[0].mxu0 %v145
  %v336 = vpop.f32.mrb[0].mxu0
  %v337 = vadd.f32 %v68, %v336
  %v338 = vpop.f32.mrb[0].mxu0
  %v339 = vpop.f32.mrb[0].mxu0
  %v340 = vadd.f32 %v68, %v339
  %v341 = vpop.f32.mrb[0].mxu0
  %342 = vmatprep.mubr.bf16.mxu0 0
  %343 = vmatmul.mubr.bf16.gmra.mrb[0].mxu0 %v146
  %v344 = vpop.f32.mrb[0].mxu0
  %v345 = vadd.f32 %v68, %v344
  %v346 = vpop.f32.mrb[0].mxu0
  %v347 = vpop.f32.mrb[0].mxu0
  %v348 = vadd.f32 %v68, %v347
  %v349 = vpop.f32.mrb[0].mxu0
  %350 = vmatprep.mubr.bf16.mxu0 0
  %351 = vmatmul.mubr.bf16.gmra.mrb[0].mxu0 %v147
  %v352 = vpop.f32.mrb[0].mxu0
  %v353 = vadd.f32 %v68, %v352
  %v354 = vpop.f32.mrb[0].mxu0
  %v355 = vpop.f32.mrb[0].mxu0
  %v356 = vadd.f32 %v68, %v355
  %v357 = vpop.f32.mrb[0].mxu0
  %358 = vmatprep.mubr.bf16.mxu0 0
  %359 = vmatmul.mubr.bf16.gmra.mrb[0].mxu0 %v148
  %v360 = vpop.f32.mrb[0].mxu0
  %v361 = vadd.f32 %v68, %v360
  %v362 = vpop.f32.mrb[0].mxu0
  %v363 = vpop.f32.mrb[0].mxu0
  %v364 = vadd.f32 %v68, %v363
  %v365 = vpop.f32.mrb[0].mxu0
  %366 = vmatprep.mubr.bf16.mxu0 0
  %367 = vmatmul.mubr.bf16.gmra.mrb[0].mxu0 %v149
  %v368 = vpop.f32.mrb[0].mxu0
  %v369 = vadd.f32 %v68, %v368
  %v370 = vpop.f32.mrb[0].mxu0
  %v371 = vpop.f32.mrb[0].mxu0
  %v372 = vadd.f32 %v68, %v371
  %v373 = vpop.f32.mrb[0].mxu0
  %374 = vdwg.mxu0
  %v375 = vtanh.pop %v249
  %v376 = vtanh.pop %v252
  %v377 = vtanh.pop %v257
  %v378 = vtanh.pop %v260
  %v379 = vtanh.pop %v265
  %v380 = vtanh.pop %v268
  %v381 = vtanh.pop %v273
  %v382 = vtanh.pop %v276
  %v383 = vtanh.pop %v281
  %v384 = vtanh.pop %v284
  %v385 = vtanh.pop %v289
  %v386 = vtanh.pop %v292
  %v387 = vtanh.pop %v297
  %v388 = vtanh.pop %v300
  %v389 = vtanh.pop %v305
  %v390 = vtanh.pop %v308
  %v391 = vtanh.pop %v313
  %v392 = vtanh.pop %v316
  %v393 = vtanh.pop %v321
  %v394 = vtanh.pop %v324
  %v395 = vtanh.pop %v329
  %v396 = vtanh.pop %v332
  %v397 = vtanh.pop %v337
  %v398 = vtanh.pop %v340
  %v399 = vtanh.pop %v345
  %v400 = vtanh.pop %v348
  %v401 = vtanh.pop %v353
  %v402 = vtanh.pop %v356
  %v403 = vtanh.pop %v361
  %v404 = vtanh.pop %v364
  %v405 = vtanh.pop %v369
  %v406 = vtanh.pop %v372
  %v407 = vpack.c.bf16 %v376, %v375
  %v408 = vpack.c.bf16 %v378, %v377
  %v409 = vpack.c.bf16 %v380, %v379
  %v410 = vpack.c.bf16 %v382, %v381
  %v411 = vpack.c.bf16 %v384, %v383
  %v412 = vpack.c.bf16 %v386, %v385
  %v413 = vpack.c.bf16 %v388, %v387
  %v414 = vpack.c.bf16 %v390, %v389
  %v415 = vpack.c.bf16 %v392, %v391
  %v416 = vpack.c.bf16 %v394, %v393
  %v417 = vpack.c.bf16 %v396, %v395
  %v418 = vpack.c.bf16 %v398, %v397
  %v419 = vpack.c.bf16 %v400, %v399
  %v420 = vpack.c.bf16 %v402, %v401
  %v421 = vpack.c.bf16 %v404, %v403
  %v422 = vpack.c.bf16 %v406, %v405
  %s423 = scalar_lea.vmem %s1, 64
  %v424 = vld [vmem:[%s423] sm:$0xf]
  %v425 = vld [vmem:[%s423 + $0x4] sm:$0xf]
  %v426 = vld [vmem:[%s423 + $0x8] sm:$0xf]
  %v427 = vld [vmem:[%s423 + $0xc] sm:$0xf]
  %v428 = vld [vmem:[%s423 + $0x10] sm:$0xf]
  %v429 = vld [vmem:[%s423 + $0x14] sm:$0xf]
  %v430 = vld [vmem:[%s423 + $0x18] sm:$0xf]
  %v431 = vld [vmem:[%s423 + $0x1c] sm:$0xf]
  %v432 = vld [vmem:[%s423 + $0x20] sm:$0xf]
  %v433 = vld [vmem:[%s423 + $0x24] sm:$0xf]
  %v434 = vld [vmem:[%s423 + $0x28] sm:$0xf]
  %v435 = vld [vmem:[%s423 + $0x2c] sm:$0xf]
  %v436 = vld [vmem:[%s423 + $0x30] sm:$0xf]
  %v437 = vld [vmem:[%s423 + $0x34] sm:$0xf]
  %v438 = vld [vmem:[%s423 + $0x38] sm:$0xf]
  %v439 = vld [vmem:[%s423 + $0x3c] sm:$0xf]
  %s440 = scalar_lea.vmem %s2, 1
  %v441 = vld [vmem:[%s440] sm:$0x1]
  %v443 = vlaneseq
  %v444 = vshrl.u32 %v443, 7
  %v445 = vsub.s32 0, %v444
  %v446 = vrot.slane %v441, %v445
  %v464 = vunpack.c.l.b16 %v424
  %v465 = vunpack.c.l.b16 %v425
  %v466 = vunpack.c.l.b16 %v426
  %v467 = vunpack.c.l.b16 %v427
  %v468 = vunpack.c.l.b16 %v428
  %v469 = vunpack.c.l.b16 %v429
  %v470 = vunpack.c.l.b16 %v430
  %v471 = vunpack.c.l.b16 %v431
  %v472 = vunpack.c.l.b16 %v432
  %v473 = vunpack.c.l.b16 %v433
  %v474 = vunpack.c.l.b16 %v434
  %v475 = vunpack.c.l.b16 %v435
  %v476 = vunpack.c.l.b16 %v436
  %v477 = vunpack.c.l.b16 %v437
  %v478 = vunpack.c.l.b16 %v438
  %v479 = vunpack.c.l.b16 %v439
  %v480 = vpack.c.b16 %v465, %v464
  %v481 = vpack.c.b16 %v467, %v466
  %v482 = vpack.c.b16 %v469, %v468
  %v483 = vpack.c.b16 %v471, %v470
  %v484 = vpack.c.b16 %v473, %v472
  %v485 = vpack.c.b16 %v475, %v474
  %v486 = vpack.c.b16 %v477, %v476
  %v487 = vpack.c.b16 %v479, %v478
  %496 = vmatprep.subr.bf16.mxu0 0
  %497 = vmatpush1.bf16.msra.mxu0 %v480
  %498 = vmatprep.subr.bf16.mxu0 0
  %499 = vmatpush1.bf16.msra.mxu0 %v481
  %500 = vmatprep.subr.bf16.mxu0 0
  %501 = vmatpush1.bf16.msra.mxu0 %v482
  %502 = vmatprep.subr.bf16.mxu0 0
  %503 = vmatpush1.bf16.msra.mxu0 %v483
  %504 = vmatprep.subr.bf16.mxu0 0
  %505 = vmatpush1.bf16.msra.mxu0 %v484
  %506 = vmatprep.subr.bf16.mxu0 0
  %507 = vmatpush1.bf16.msra.mxu0 %v485
  %508 = vmatprep.subr.bf16.mxu0 0
  %509 = vmatpush1.bf16.msra.mxu0 %v486
  %510 = vmatprep.subr.bf16.mxu0 0
  %511 = vmatpush1.bf16.msra.mxu0 %v487
  %512 = vmatprep.subr.bf16.mxu0 0
  %513 = vmatpush1.bf16.msra.mxu0 0
  %514 = vmatprep.subr.bf16.mxu0 0
  %515 = vmatpush1.bf16.msra.mxu0 0
  %516 = vmatprep.subr.bf16.mxu0 0
  %517 = vmatpush1.bf16.msra.mxu0 0
  %518 = vmatprep.subr.bf16.mxu0 0
  %519 = vmatpush1.bf16.msra.mxu0 0
  %520 = vmatprep.subr.bf16.mxu0 0
  %521 = vmatpush1.bf16.msra.mxu0 0
  %522 = vmatprep.subr.bf16.mxu0 0
  %523 = vmatpush1.bf16.msra.mxu0 0
  %524 = vmatprep.subr.bf16.mxu0 0
  %525 = vmatpush1.bf16.msra.mxu0 0
  %526 = vmatprep.subr.bf16.mxu0 0
  %527 = vmatpush1.bf16.msra.mxu0 0
  %528 = vmatprep.mubr.bf16.mxu0 0
  %529 = vmatmul.mubr.bf16.gmra.mrb[0].mxu0 %v407
  %v530 = vpop.f32.mrb[0].mxu0
  %v531 = vadd.f32 %v446, %v530
  %v532 = vpop.f32.mrb[0].mxu0
  %v533 = vpop.f32.mrb[0].mxu0
  %v534 = vadd.f32 %v446, %v533
  %v535 = vpop.f32.mrb[0].mxu0
  %536 = vmatprep.mubr.bf16.mxu0 0
  %537 = vmatmul.mubr.bf16.gmra.mrb[0].mxu0 %v408
  %v538 = vpop.f32.mrb[0].mxu0
  %v539 = vadd.f32 %v446, %v538
  %v540 = vpop.f32.mrb[0].mxu0
  %v541 = vpop.f32.mrb[0].mxu0
  %v542 = vadd.f32 %v446, %v541
  %v543 = vpop.f32.mrb[0].mxu0
  %544 = vmatprep.mubr.bf16.mxu0 0
  %545 = vmatmul.mubr.bf16.gmra.mrb[0].mxu0 %v409
  %v546 = vpop.f32.mrb[0].mxu0
  %v547 = vadd.f32 %v446, %v546
  %v548 = vpop.f32.mrb[0].mxu0
  %v549 = vpop.f32.mrb[0].mxu0
  %v550 = vadd.f32 %v446, %v549
  %v551 = vpop.f32.mrb[0].mxu0
  %552 = vmatprep.mubr.bf16.mxu0 0
  %553 = vmatmul.mubr.bf16.gmra.mrb[0].mxu0 %v410
  %v554 = vpop.f32.mrb[0].mxu0
  %v555 = vadd.f32 %v446, %v554
  %v556 = vpop.f32.mrb[0].mxu0
  %v557 = vpop.f32.mrb[0].mxu0
  %v558 = vadd.f32 %v446, %v557
  %v559 = vpop.f32.mrb[0].mxu0
  %560 = vmatprep.mubr.bf16.mxu0 0
  %561 = vmatmul.mubr.bf16.gmra.mrb[0].mxu0 %v411
  %v562 = vpop.f32.mrb[0].mxu0
  %v563 = vadd.f32 %v446, %v562
  %v564 = vpop.f32.mrb[0].mxu0
  %v565 = vpop.f32.mrb[0].mxu0
  %v566 = vadd.f32 %v446, %v565
  %v567 = vpop.f32.mrb[0].mxu0
  %568 = vmatprep.mubr.bf16.mxu0 0
  %569 = vmatmul.mubr.bf16.gmra.mrb[0].mxu0 %v412
  %v570 = vpop.f32.mrb[0].mxu0
  %v571 = vadd.f32 %v446, %v570
  %v572 = vpop.f32.mrb[0].mxu0
  %v573 = vpop.f32.mrb[0].mxu0
  %v574 = vadd.f32 %v446, %v573
  %v575 = vpop.f32.mrb[0].mxu0
  %576 = vmatprep.mubr.bf16.mxu0 0
  %577 = vmatmul.mubr.bf16.gmra.mrb[0].mxu0 %v413
  %v578 = vpop.f32.mrb[0].mxu0
  %v579 = vadd.f32 %v446, %v578
  %v580 = vpop.f32.mrb[0].mxu0
  %v581 = vpop.f32.mrb[0].mxu0
  %v582 = vadd.f32 %v446, %v581
  %v583 = vpop.f32.mrb[0].mxu0
  %584 = vmatprep.mubr.bf16.mxu0 0
  %585 = vmatmul.mubr.bf16.gmra.mrb[0].mxu0 %v414
  %v586 = vpop.f32.mrb[0].mxu0
  %v587 = vadd.f32 %v446, %v586
  %v588 = vpop.f32.mrb[0].mxu0
  %v589 = vpop.f32.mrb[0].mxu0
  %v590 = vadd.f32 %v446, %v589
  %v591 = vpop.f32.mrb[0].mxu0
  %592 = vmatprep.mubr.bf16.mxu0 0
  %593 = vmatmul.mubr.bf16.gmra.mrb[0].mxu0 %v415
  %v594 = vpop.f32.mrb[0].mxu0
  %v595 = vadd.f32 %v446, %v594
  %v596 = vpop.f32.mrb[0].mxu0
  %v597 = vpop.f32.mrb[0].mxu0
  %v598 = vadd.f32 %v446, %v597
  %v599 = vpop.f32.mrb[0].mxu0
  %600 = vmatprep.mubr.bf16.mxu0 0
  %601 = vmatmul.mubr.bf16.gmra.mrb[0].mxu0 %v416
  %v602 = vpop.f32.mrb[0].mxu0
  %v603 = vadd.f32 %v446, %v602
  %v604 = vpop.f32.mrb[0].mxu0
  %v605 = vpop.f32.mrb[0].mxu0
  %v606 = vadd.f32 %v446, %v605
  %v607 = vpop.f32.mrb[0].mxu0
  %608 = vmatprep.mubr.bf16.mxu0 0
  %609 = vmatmul.mubr.bf16.gmra.mrb[0].mxu0 %v417
  %v610 = vpop.f32.mrb[0].mxu0
  %v611 = vadd.f32 %v446, %v610
  %v612 = vpop.f32.mrb[0].mxu0
  %v613 = vpop.f32.mrb[0].mxu0
  %v614 = vadd.f32 %v446, %v613
  %v615 = vpop.f32.mrb[0].mxu0
  %616 = vmatprep.mubr.bf16.mxu0 0
  %617 = vmatmul.mubr.bf16.gmra.mrb[0].mxu0 %v418
  %v618 = vpop.f32.mrb[0].mxu0
  %v619 = vadd.f32 %v446, %v618
  %v620 = vpop.f32.mrb[0].mxu0
  %v621 = vpop.f32.mrb[0].mxu0
  %v622 = vadd.f32 %v446, %v621
  %v623 = vpop.f32.mrb[0].mxu0
  %624 = vmatprep.mubr.bf16.mxu0 0
  %625 = vmatmul.mubr.bf16.gmra.mrb[0].mxu0 %v419
  %v626 = vpop.f32.mrb[0].mxu0
  %v627 = vadd.f32 %v446, %v626
  %v628 = vpop.f32.mrb[0].mxu0
  %v629 = vpop.f32.mrb[0].mxu0
  %v630 = vadd.f32 %v446, %v629
  %v631 = vpop.f32.mrb[0].mxu0
  %632 = vmatprep.mubr.bf16.mxu0 0
  %633 = vmatmul.mubr.bf16.gmra.mrb[0].mxu0 %v420
  %v634 = vpop.f32.mrb[0].mxu0
  %v635 = vadd.f32 %v446, %v634
  %v636 = vpop.f32.mrb[0].mxu0
  %v637 = vpop.f32.mrb[0].mxu0
  %v638 = vadd.f32 %v446, %v637
  %v639 = vpop.f32.mrb[0].mxu0
  %640 = vmatprep.mubr.bf16.mxu0 0
  %641 = vmatmul.mubr.bf16.gmra.mrb[0].mxu0 %v421
  %v642 = vpop.f32.mrb[0].mxu0
  %v643 = vadd.f32 %v446, %v642
  %v644 = vpop.f32.mrb[0].mxu0
  %v645 = vpop.f32.mrb[0].mxu0
  %v646 = vadd.f32 %v446, %v645
  %v647 = vpop.f32.mrb[0].mxu0
  %648 = vmatprep.mubr.bf16.mxu0 0
  %649 = vmatmul.mubr.bf16.gmra.mrb[0].mxu0 %v422
  %v650 = vpop.f32.mrb[0].mxu0
  %v651 = vadd.f32 %v446, %v650
  %v652 = vpop.f32.mrb[0].mxu0
  %v653 = vpop.f32.mrb[0].mxu0
  %v654 = vadd.f32 %v446, %v653
  %v655 = vpop.f32.mrb[0].mxu0
  %656 = vdwg.mxu0
  %v657 = vtanh.pop %v531
  %v658 = vtanh.pop %v534
  %v659 = vtanh.pop %v539
  %v660 = vtanh.pop %v542
  %v661 = vtanh.pop %v547
  %v662 = vtanh.pop %v550
  %v663 = vtanh.pop %v555
  %v664 = vtanh.pop %v558
  %v665 = vtanh.pop %v563
  %v666 = vtanh.pop %v566
  %v667 = vtanh.pop %v571
  %v668 = vtanh.pop %v574
  %v669 = vtanh.pop %v579
  %v670 = vtanh.pop %v582
  %v671 = vtanh.pop %v587
  %v672 = vtanh.pop %v590
  %v673 = vtanh.pop %v595
  %v674 = vtanh.pop %v598
  %v675 = vtanh.pop %v603
  %v676 = vtanh.pop %v606
  %v677 = vtanh.pop %v611
  %v678 = vtanh.pop %v614
  %v679 = vtanh.pop %v619
  %v680 = vtanh.pop %v622
  %v681 = vtanh.pop %v627
  %v682 = vtanh.pop %v630
  %v683 = vtanh.pop %v635
  %v684 = vtanh.pop %v638
  %v685 = vtanh.pop %v643
  %v686 = vtanh.pop %v646
  %v687 = vtanh.pop %v651
  %v688 = vtanh.pop %v654
  %v689 = vpack.c.bf16 %v658, %v657
  %v690 = vpack.c.bf16 %v660, %v659
  %v691 = vpack.c.bf16 %v662, %v661
  %v692 = vpack.c.bf16 %v664, %v663
  %v693 = vpack.c.bf16 %v666, %v665
  %v694 = vpack.c.bf16 %v668, %v667
  %v695 = vpack.c.bf16 %v670, %v669
  %v696 = vpack.c.bf16 %v672, %v671
  %v697 = vpack.c.bf16 %v674, %v673
  %v698 = vpack.c.bf16 %v676, %v675
  %v699 = vpack.c.bf16 %v678, %v677
  %v700 = vpack.c.bf16 %v680, %v679
  %v701 = vpack.c.bf16 %v682, %v681
  %v702 = vpack.c.bf16 %v684, %v683
  %v703 = vpack.c.bf16 %v686, %v685
  %v704 = vpack.c.bf16 %v688, %v687
  %s705 = scalar_lea.vmem %s1, 128
  %v706 = vld [vmem:[%s705] sm:$0xf]
  %v707 = vld [vmem:[%s705 + $0x4] sm:$0xf]
  %v708 = vld [vmem:[%s705 + $0x8] sm:$0xf]
  %v709 = vld [vmem:[%s705 + $0xc] sm:$0xf]
  %v710 = vld [vmem:[%s705 + $0x10] sm:$0xf]
  %v711 = vld [vmem:[%s705 + $0x14] sm:$0xf]
  %v712 = vld [vmem:[%s705 + $0x18] sm:$0xf]
  %v713 = vld [vmem:[%s705 + $0x1c] sm:$0xf]
  %v714 = vld [vmem:[%s705 + $0x20] sm:$0xf]
  %v715 = vld [vmem:[%s705 + $0x24] sm:$0xf]
  %v716 = vld [vmem:[%s705 + $0x28] sm:$0xf]
  %v717 = vld [vmem:[%s705 + $0x2c] sm:$0xf]
  %v718 = vld [vmem:[%s705 + $0x30] sm:$0xf]
  %v719 = vld [vmem:[%s705 + $0x34] sm:$0xf]
  %v720 = vld [vmem:[%s705 + $0x38] sm:$0xf]
  %v721 = vld [vmem:[%s705 + $0x3c] sm:$0xf]
  %s722 = scalar_lea.vmem %s2, 2
  %v723 = vld [vmem:[%s722] sm:$0x1]
  %v725 = vlaneseq
  %v726 = vshrl.u32 %v725, 7
  %v727 = vsub.s32 0, %v726
  %v728 = vrot.slane %v723, %v727
  %v746 = vunpack.c.l.b16 %v706
  %v747 = vunpack.c.l.b16 %v707
  %v748 = vunpack.c.l.b16 %v708
  %v749 = vunpack.c.l.b16 %v709
  %v750 = vunpack.c.l.b16 %v710
  %v751 = vunpack.c.l.b16 %v711
  %v752 = vunpack.c.l.b16 %v712
  %v753 = vunpack.c.l.b16 %v713
  %v754 = vunpack.c.l.b16 %v714
  %v755 = vunpack.c.l.b16 %v715
  %v756 = vunpack.c.l.b16 %v716
  %v757 = vunpack.c.l.b16 %v717
  %v758 = vunpack.c.l.b16 %v718
  %v759 = vunpack.c.l.b16 %v719
  %v760 = vunpack.c.l.b16 %v720
  %v761 = vunpack.c.l.b16 %v721
  %v762 = vpack.c.b16 %v747, %v746
  %v763 = vpack.c.b16 %v749, %v748
  %v764 = vpack.c.b16 %v751, %v750
  %v765 = vpack.c.b16 %v753, %v752
  %v766 = vpack.c.b16 %v755, %v754
  %v767 = vpack.c.b16 %v757, %v756
  %v768 = vpack.c.b16 %v759, %v758
  %v769 = vpack.c.b16 %v761, %v760
  %778 = vmatprep.subr.bf16.mxu0 0
  %779 = vmatpush1.bf16.msra.mxu0 %v762
  %780 = vmatprep.subr.bf16.mxu0 0
  %781 = vmatpush1.bf16.msra.mxu0 %v763
  %782 = vmatprep.subr.bf16.mxu0 0
  %783 = vmatpush1.bf16.msra.mxu0 %v764
  %784 = vmatprep.subr.bf16.mxu0 0
  %785 = vmatpush1.bf16.msra.mxu0 %v765
  %786 = vmatprep.subr.bf16.mxu0 0
  %787 = vmatpush1.bf16.msra.mxu0 %v766
  %788 = vmatprep.subr.bf16.mxu0 0
  %789 = vmatpush1.bf16.msra.mxu0 %v767
  %790 = vmatprep.subr.bf16.mxu0 0
  %791 = vmatpush1.bf16.msra.mxu0 %v768
  %792 = vmatprep.subr.bf16.mxu0 0
  %793 = vmatpush1.bf16.msra.mxu0 %v769
  %794 = vmatprep.subr.bf16.mxu0 0
  %795 = vmatpush1.bf16.msra.mxu0 0
  %796 = vmatprep.subr.bf16.mxu0 0
  %797 = vmatpush1.bf16.msra.mxu0 0
  %798 = vmatprep.subr.bf16.mxu0 0
  %799 = vmatpush1.bf16.msra.mxu0 0
  %800 = vmatprep.subr.bf16.mxu0 0
  %801 = vmatpush1.bf16.msra.mxu0 0
  %802 = vmatprep.subr.bf16.mxu0 0
  %803 = vmatpush1.bf16.msra.mxu0 0
  %804 = vmatprep.subr.bf16.mxu0 0
  %805 = vmatpush1.bf16.msra.mxu0 0
  %806 = vmatprep.subr.bf16.mxu0 0
  %807 = vmatpush1.bf16.msra.mxu0 0
  %808 = vmatprep.subr.bf16.mxu0 0
  %809 = vmatpush1.bf16.msra.mxu0 0
  %810 = vmatprep.mubr.bf16.mxu0 0
  %811 = vmatmul.mubr.bf16.gmra.mrb[0].mxu0 %v689
  %v812 = vpop.f32.mrb[0].mxu0
  %v813 = vadd.f32 %v728, %v812
  %v814 = vpop.f32.mrb[0].mxu0
  %v815 = vpop.f32.mrb[0].mxu0
  %v816 = vadd.f32 %v728, %v815
  %v817 = vpop.f32.mrb[0].mxu0
  %818 = vmatprep.mubr.bf16.mxu0 0
  %819 = vmatmul.mubr.bf16.gmra.mrb[0].mxu0 %v690
  %v820 = vpop.f32.mrb[0].mxu0
  %v821 = vadd.f32 %v728, %v820
  %v822 = vpop.f32.mrb[0].mxu0
  %v823 = vpop.f32.mrb[0].mxu0
  %v824 = vadd.f32 %v728, %v823
  %v825 = vpop.f32.mrb[0].mxu0
  %826 = vmatprep.mubr.bf16.mxu0 0
  %827 = vmatmul.mubr.bf16.gmra.mrb[0].mxu0 %v691
  %v828 = vpop.f32.mrb[0].mxu0
  %v829 = vadd.f32 %v728, %v828
  %v830 = vpop.f32.mrb[0].mxu0
  %v831 = vpop.f32.mrb[0].mxu0
  %v832 = vadd.f32 %v728, %v831
  %v833 = vpop.f32.mrb[0].mxu0
  %834 = vmatprep.mubr.bf16.mxu0 0
  %835 = vmatmul.mubr.bf16.gmra.mrb[0].mxu0 %v692
  %v836 = vpop.f32.mrb[0].mxu0
  %v837 = vadd.f32 %v728, %v836
  %v838 = vpop.f32.mrb[0].mxu0
  %v839 = vpop.f32.mrb[0].mxu0
  %v840 = vadd.f32 %v728, %v839
  %v841 = vpop.f32.mrb[0].mxu0
  %842 = vmatprep.mubr.bf16.mxu0 0
  %843 = vmatmul.mubr.bf16.gmra.mrb[0].mxu0 %v693
  %v844 = vpop.f32.mrb[0].mxu0
  %v845 = vadd.f32 %v728, %v844
  %v846 = vpop.f32.mrb[0].mxu0
  %v847 = vpop.f32.mrb[0].mxu0
  %v848 = vadd.f32 %v728, %v847
  %v849 = vpop.f32.mrb[0].mxu0
  %850 = vmatprep.mubr.bf16.mxu0 0
  %851 = vmatmul.mubr.bf16.gmra.mrb[0].mxu0 %v694
  %v852 = vpop.f32.mrb[0].mxu0
  %v853 = vadd.f32 %v728, %v852
  %v854 = vpop.f32.mrb[0].mxu0
  %v855 = vpop.f32.mrb[0].mxu0
  %v856 = vadd.f32 %v728, %v855
  %v857 = vpop.f32.mrb[0].mxu0
  %858 = vmatprep.mubr.bf16.mxu0 0
  %859 = vmatmul.mubr.bf16.gmra.mrb[0].mxu0 %v695
  %v860 = vpop.f32.mrb[0].mxu0
  %v861 = vadd.f32 %v728, %v860
  %v862 = vpop.f32.mrb[0].mxu0
  %v863 = vpop.f32.mrb[0].mxu0
  %v864 = vadd.f32 %v728, %v863
  %v865 = vpop.f32.mrb[0].mxu0
  %866 = vmatprep.mubr.bf16.mxu0 0
  %867 = vmatmul.mubr.bf16.gmra.mrb[0].mxu0 %v696
  %v868 = vpop.f32.mrb[0].mxu0
  %v869 = vadd.f32 %v728, %v868
  %v870 = vpop.f32.mrb[0].mxu0
  %v871 = vpop.f32.mrb[0].mxu0
  %v872 = vadd.f32 %v728, %v871
  %v873 = vpop.f32.mrb[0].mxu0
  %874 = vmatprep.mubr.bf16.mxu0 0
  %875 = vmatmul.mubr.bf16.gmra.mrb[0].mxu0 %v697
  %v876 = vpop.f32.mrb[0].mxu0
  %v877 = vadd.f32 %v728, %v876
  %v878 = vpop.f32.mrb[0].mxu0
  %v879 = vpop.f32.mrb[0].mxu0
  %v880 = vadd.f32 %v728, %v879
  %v881 = vpop.f32.mrb[0].mxu0
  %882 = vmatprep.mubr.bf16.mxu0 0
  %883 = vmatmul.mubr.bf16.gmra.mrb[0].mxu0 %v698
  %v884 = vpop.f32.mrb[0].mxu0
  %v885 = vadd.f32 %v728, %v884
  %v886 = vpop.f32.mrb[0].mxu0
  %v887 = vpop.f32.mrb[0].mxu0
  %v888 = vadd.f32 %v728, %v887
  %v889 = vpop.f32.mrb[0].mxu0
  %890 = vmatprep.mubr.bf16.mxu0 0
  %891 = vmatmul.mubr.bf16.gmra.mrb[0].mxu0 %v699
  %v892 = vpop.f32.mrb[0].mxu0
  %v893 = vadd.f32 %v728, %v892
  %v894 = vpop.f32.mrb[0].mxu0
  %v895 = vpop.f32.mrb[0].mxu0
  %v896 = vadd.f32 %v728, %v895
  %v897 = vpop.f32.mrb[0].mxu0
  %898 = vmatprep.mubr.bf16.mxu0 0
  %899 = vmatmul.mubr.bf16.gmra.mrb[0].mxu0 %v700
  %v900 = vpop.f32.mrb[0].mxu0
  %v901 = vadd.f32 %v728, %v900
  %v902 = vpop.f32.mrb[0].mxu0
  %v903 = vpop.f32.mrb[0].mxu0
  %v904 = vadd.f32 %v728, %v903
  %v905 = vpop.f32.mrb[0].mxu0
  %906 = vmatprep.mubr.bf16.mxu0 0
  %907 = vmatmul.mubr.bf16.gmra.mrb[0].mxu0 %v701
  %v908 = vpop.f32.mrb[0].mxu0
  %v909 = vadd.f32 %v728, %v908
  %v910 = vpop.f32.mrb[0].mxu0
  %v911 = vpop.f32.mrb[0].mxu0
  %v912 = vadd.f32 %v728, %v911
  %v913 = vpop.f32.mrb[0].mxu0
  %914 = vmatprep.mubr.bf16.mxu0 0
  %915 = vmatmul.mubr.bf16.gmra.mrb[0].mxu0 %v702
  %v916 = vpop.f32.mrb[0].mxu0
  %v917 = vadd.f32 %v728, %v916
  %v918 = vpop.f32.mrb[0].mxu0
  %v919 = vpop.f32.mrb[0].mxu0
  %v920 = vadd.f32 %v728, %v919
  %v921 = vpop.f32.mrb[0].mxu0
  %922 = vmatprep.mubr.bf16.mxu0 0
  %923 = vmatmul.mubr.bf16.gmra.mrb[0].mxu0 %v703
  %v924 = vpop.f32.mrb[0].mxu0
  %v925 = vadd.f32 %v728, %v924
  %v926 = vpop.f32.mrb[0].mxu0
  %v927 = vpop.f32.mrb[0].mxu0
  %v928 = vadd.f32 %v728, %v927
  %v929 = vpop.f32.mrb[0].mxu0
  %930 = vmatprep.mubr.bf16.mxu0 0
  %931 = vmatmul.mubr.bf16.gmra.mrb[0].mxu0 %v704
  %v932 = vpop.f32.mrb[0].mxu0
  %v933 = vadd.f32 %v728, %v932
  %v934 = vpop.f32.mrb[0].mxu0
  %v935 = vpop.f32.mrb[0].mxu0
  %v936 = vadd.f32 %v728, %v935
  %v937 = vpop.f32.mrb[0].mxu0
  %938 = vdwg.mxu0
  %939 = vst [vmem:[%s3] sm:$0xff] %v813
  %940 = vst [vmem:[%s3 + $0x8] sm:$0xff] %v816
  %941 = vst [vmem:[%s3 + $0x10] sm:$0xff] %v821
  %942 = vst [vmem:[%s3 + $0x18] sm:$0xff] %v824
  %943 = vst [vmem:[%s3 + $0x20] sm:$0xff] %v829
  %944 = vst [vmem:[%s3 + $0x28] sm:$0xff] %v832
  %945 = vst [vmem:[%s3 + $0x30] sm:$0xff] %v837
  %946 = vst [vmem:[%s3 + $0x38] sm:$0xff] %v840
  %947 = vst [vmem:[%s3 + $0x40] sm:$0xff] %v845
  %948 = vst [vmem:[%s3 + $0x48] sm:$0xff] %v848
  %949 = vst [vmem:[%s3 + $0x50] sm:$0xff] %v853
  %950 = vst [vmem:[%s3 + $0x58] sm:$0xff] %v856
  %951 = vst [vmem:[%s3 + $0x60] sm:$0xff] %v861
  %952 = vst [vmem:[%s3 + $0x68] sm:$0xff] %v864
  %953 = vst [vmem:[%s3 + $0x70] sm:$0xff] %v869
  %954 = vst [vmem:[%s3 + $0x78] sm:$0xff] %v872
  %955 = vst [vmem:[%s3 + $0x80] sm:$0xff] %v877
  %956 = vst [vmem:[%s3 + $0x88] sm:$0xff] %v880
  %957 = vst [vmem:[%s3 + $0x90] sm:$0xff] %v885
  %958 = vst [vmem:[%s3 + $0x98] sm:$0xff] %v888
  %959 = vst [vmem:[%s3 + $0xa0] sm:$0xff] %v893
  %960 = vst [vmem:[%s3 + $0xa8] sm:$0xff] %v896
  %961 = vst [vmem:[%s3 + $0xb0] sm:$0xff] %v901
  %962 = vst [vmem:[%s3 + $0xb8] sm:$0xff] %v904
  %963 = vst [vmem:[%s3 + $0xc0] sm:$0xff] %v909
  %964 = vst [vmem:[%s3 + $0xc8] sm:$0xff] %v912
  %965 = vst [vmem:[%s3 + $0xd0] sm:$0xff] %v917
  %966 = vst [vmem:[%s3 + $0xd8] sm:$0xff] %v920
  %967 = vst [vmem:[%s3 + $0xe0] sm:$0xff] %v925
  %968 = vst [vmem:[%s3 + $0xe8] sm:$0xff] %v928
  %969 = vst [vmem:[%s3 + $0xf0] sm:$0xff] %v933
  %970 = vst [vmem:[%s3 + $0xf8] sm:$0xff] %v936
  // Predicated region
  $region14: #{_mlp_forward_padded.1} parent=0 // pred_check
    _
  $region15: #{_mlp_forward_padded.1} parent=0 // pred_check_branch
    %972 = sbr.rel (0) target = $region17
  $region16: #{_mlp_forward_padded.1} parent=0 // pred_region
    _
  $region17: #{_mlp_forward_padded.1} parent=0 // pred_fallthru
    _
  // Predicated region
  $region18: #{_mlp_forward_padded.1} parent=0 // pred_check
    _
  $region19: #{_mlp_forward_padded.1} parent=0 // pred_check_branch
    %974 = sbr.rel (0) target = $region21
  $region20: #{_mlp_forward_padded.1} parent=0 // pred_region
    _
  $region21: #{_mlp_forward_padded.1} parent=0 // pred_fallthru
    _

// kernel: _mlp_forward_padded.1
$region0: #{_mlp_forward_padded.1}
  #allocation0 [shape = 'u32[]', space=smem, size = 0x4, offset = 0x4, fixed_abs, tag = 'smem constant byte address 0x4 - core index']
  #allocation1 [shape = 'u32[144,128]{1,0:T(1,128)}', space=vmem, size = 0x12000, scoped, tag = 'internal scratch']
  %s0 = inlined_call_operand.vmem [shape: bf16[256,128], index: 0, kind: input, shape index: {}]
  %s1 = inlined_call_operand.vmem [shape: bf16[3,128,128], index: 1, kind: input, shape index: {}]
  %s2 = inlined_call_operand.vmem [shape: f32[3,1,128], index: 2, kind: input, shape index: {}]
  %s3 = inlined_call_operand.vmem [shape: f32[256,128], index: 3, kind: output, shape index: {}]
  %s4 = sld [smem:[#allocation0]]
  $region22: #{_mlp_forward_padded.1} parent=0
    _
  %s6 = ssub.s32 1, %s4
  %s7 = scalar_select 0, %s6, %s4
  // Predicated region
  $region2: #{_mlp_forward_padded.1} parent=0 // pred_check
    _
  $region3: #{_mlp_forward_padded.1} parent=0 // pred_check_branch
    %9 = sbr.rel (0) target = $region5
  $region4: #{_mlp_forward_padded.1} parent=0 // pred_region
    _
  $region5: #{_mlp_forward_padded.1} parent=0 // pred_fallthru
    _
  // Predicated region
  $region6: #{_mlp_forward_padded.1} parent=0 // pred_check
    _
  $region7: #{_mlp_forward_padded.1} parent=0 // pred_check_branch
    %11 = sbr.rel (0) target = $region9
  $region8: #{_mlp_forward_padded.1} parent=0 // pred_region
    _
  $region9: #{_mlp_forward_padded.1} parent=0 // pred_fallthru
    _
  // Predicated region
  $region10: #{_mlp_forward_padded.1} parent=0 // pred_check
    _
  $region11: #{_mlp_forward_padded.1} parent=0 // pred_check_branch
    %13 = sbr.rel (0) target = $region13
  $region12: #{_mlp_forward_padded.1} parent=0 // pred_region
    _
  $region13: #{_mlp_forward_padded.1} parent=0 // pred_fallthru
    _
  %v15 = vld [vmem:[%s0] sm:$0xf]
  %v16 = vld [vmem:[%s0 + $0x4] sm:$0xf]
  %v17 = vld [vmem:[%s0 + $0x8] sm:$0xf]
  %v18 = vld [vmem:[%s0 + $0xc] sm:$0xf]
  %v19 = vld [vmem:[%s0 + $0x10] sm:$0xf]
  %v20 = vld [vmem:[%s0 + $0x14] sm:$0xf]
  %v21 = vld [vmem:[%s0 + $0x18] sm:$0xf]
  %v22 = vld [vmem:[%s0 + $0x1c] sm:$0xf]
  %v23 = vld [vmem:[%s0 + $0x20] sm:$0xf]
  %v24 = vld [vmem:[%s0 + $0x24] sm:$0xf]
  %v25 = vld [vmem:[%s0 + $0x28] sm:$0xf]
  %v26 = vld [vmem:[%s0 + $0x2c] sm:$0xf]
  %v27 = vld [vmem:[%s0 + $0x30] sm:$0xf]
  %v28 = vld [vmem:[%s0 + $0x34] sm:$0xf]
  %v29 = vld [vmem:[%s0 + $0x38] sm:$0xf]
  %v30 = vld [vmem:[%s0 + $0x3c] sm:$0xf]
  %v31 = vld [vmem:[%s0 + $0x40] sm:$0xf]
  %v32 = vld [vmem:[%s0 + $0x44] sm:$0xf]
  %v33 = vld [vmem:[%s0 + $0x48] sm:$0xf]
  %v34 = vld [vmem:[%s0 + $0x4c] sm:$0xf]
  %v35 = vld [vmem:[%s0 + $0x50] sm:$0xf]
  %v36 = vld [vmem:[%s0 + $0x54] sm:$0xf]
  %v37 = vld [vmem:[%s0 + $0x58] sm:$0xf]
  %v38 = vld [vmem:[%s0 + $0x5c] sm:$0xf]
  %v39 = vld [vmem:[%s0 + $0x60] sm:$0xf]
  %v40 = vld [vmem:[%s0 + $0x64] sm:$0xf]
  %v41 = vld [vmem:[%s0 + $0x68] sm:$0xf]
  %v42 = vld [vmem:[%s0 + $0x6c] sm:$0xf]
  %v43 = vld [vmem:[%s0 + $0x70] sm:$0xf]
  %v44 = vld [vmem:[%s0 + $0x74] sm:$0xf]
  %v45 = vld [vmem:[%s0 + $0x78] sm:$0xf]
  %v46 = vld [vmem:[%s0 + $0x7c] sm:$0xf]
  %v47 = vld [vmem:[%s1] sm:$0xf]
  %v48 = vld [vmem:[%s1 + $0x4] sm:$0xf]
  %v49 = vld [vmem:[%s1 + $0x8] sm:$0xf]
  %v50 = vld [vmem:[%s1 + $0xc] sm:$0xf]
  %v51 = vld [vmem:[%s1 + $0x10] sm:$0xf]
  %v52 = vld [vmem:[%s1 + $0x14] sm:$0xf]
  %v53 = vld [vmem:[%s1 + $0x18] sm:$0xf]
  %v54 = vld [vmem:[%s1 + $0x1c] sm:$0xf]
  %v55 = vld [vmem:[%s1 + $0x20] sm:$0xf]
  %v56 = vld [vmem:[%s1 + $0x24] sm:$0xf]
  %v57 = vld [vmem:[%s1 + $0x28] sm:$0xf]
  %v58 = vld [vmem:[%s1 + $0x2c] sm:$0xf]
  %v59 = vld [vmem:[%s1 + $0x30] sm:$0xf]
  %v60 = vld [vmem:[%s1 + $0x34] sm:$0xf]
  %v61 = vld [vmem:[%s1 + $0x38] sm:$0xf]
  %v62 = vld [vmem:[%s1 + $0x3c] sm:$0xf]
  %v63 = vld [vmem:[%s2] sm:$0x1]
  %v65 = vlaneseq
  %v66 = vshrl.u32 %v65, 7
  %v67 = vsub.s32 0, %v66
  %v68 = vrot.slane %v63, %v67
  %v102 = vunpack.c.l.b16 %v15
  %v103 = vunpack.c.l.b16 %v16
  %v104 = vunpack.c.l.b16 %v17
  %v105 = vunpack.c.l.b16 %v18
  %v106 = vunpack.c.l.b16 %v19
  %v107 = vunpack.c.l.b16 %v20
  %v108 = vunpack.c.l.b16 %v21
  %v109 = vunpack.c.l.b16 %v22
  %v110 = vunpack.c.l.b16 %v23
  %v111 = vunpack.c.l.b16 %v24
  %v112 = vunpack.c.l.b16 %v25
  %v113 = vunpack.c.l.b16 %v26
  %v114 = vunpack.c.l.b16 %v27
  %v115 = vunpack.c.l.b16 %v28
  %v116 = vunpack.c.l.b16 %v29
  %v117 = vunpack.c.l.b16 %v30
  %v118 = vunpack.c.l.b16 %v31
  %v119 = vunpack.c.l.b16 %v32
  %v120 = vunpack.c.l.b16 %v33
  %v121 = vunpack.c.l.b16 %v34
  %v122 = vunpack.c.l.b16 %v35
  %v123 = vunpack.c.l.b16 %v36
  %v124 = vunpack.c.l.b16 %v37
  %v125 = vunpack.c.l.b16 %v38
  %v126 = vunpack.c.l.b16 %v39
  %v127 = vunpack.c.l.b16 %v40
  %v128 = vunpack.c.l.b16 %v41
  %v129 = vunpack.c.l.b16 %v42
  %v130 = vunpack.c.l.b16 %v43
  %v131 = vunpack.c.l.b16 %v44
  %v132 = vunpack.c.l.b16 %v45
  %v133 = vunpack.c.l.b16 %v46
  %v134 = vpack.c.b16 %v103, %v102
  %v135 = vpack.c.b16 %v105, %v104
  %v136 = vpack.c.b16 %v107, %v106
  %v137 = vpack.c.b16 %v109, %v108
  %v138 = vpack.c.b16 %v111, %v110
  %v139 = vpack.c.b16 %v113, %v112
  %v140 = vpack.c.b16 %v115, %v114
  %v141 = vpack.c.b16 %v117, %v116
  %v142 = vpack.c.b16 %v119, %v118
  %v143 = vpack.c.b16 %v121, %v120
  %v144 = vpack.c.b16 %v123, %v122
  %v145 = vpack.c.b16 %v125, %v124
  %v146 = vpack.c.b16 %v127, %v126
  %v147 = vpack.c.b16 %v129, %v128
  %v148 = vpack.c.b16 %v131, %v130
  %v149 = vpack.c.b16 %v133, %v132
  %v182 = vunpack.c.l.b16 %v47
  %v183 = vunpack.c.l.b16 %v48
  %v184 = vunpack.c.l.b16 %v49
  %v185 = vunpack.c.l.b16 %v50
  %v186 = vunpack.c.l.b16 %v51
  %v187 = vunpack.c.l.b16 %v52
  %v188 = vunpack.c.l.b16 %v53
  %v189 = vunpack.c.l.b16 %v54
  %v190 = vunpack.c.l.b16 %v55
  %v191 = vunpack.c.l.b16 %v56
  %v192 = vunpack.c.l.b16 %v57
  %v193 = vunpack.c.l.b16 %v58
  %v194 = vunpack.c.l.b16 %v59
  %v195 = vunpack.c.l.b16 %v60
  %v196 = vunpack.c.l.b16 %v61
  %v197 = vunpack.c.l.b16 %v62
  %v198 = vpack.c.b16 %v183, %v182
  %v199 = vpack.c.b16 %v185, %v184
  %v200 = vpack.c.b16 %v187, %v186
  %v201 = vpack.c.b16 %v189, %v188
  %v202 = vpack.c.b16 %v191, %v190
  %v203 = vpack.c.b16 %v193, %v192
  %v204 = vpack.c.b16 %v195, %v194
  %v205 = vpack.c.b16 %v197, %v196
  %214 = vmatprep.subr.bf16.mxu0 0
  %215 = vmatpush1.bf16.msra.mxu0 %v198
  %216 = vmatprep.subr.bf16.mxu0 0
  %217 = vmatpush1.bf16.msra.mxu0 %v199
  %218 = vmatprep.subr.bf16.mxu0 0
  %219 = vmatpush1.bf16.msra.mxu0 %v200
  %220 = vmatprep.subr.bf16.mxu0 0
  %221 = vmatpush1.bf16.msra.mxu0 %v201
  %222 = vmatprep.subr.bf16.mxu0 0
  %223 = vmatpush1.bf16.msra.mxu0 %v202
  %224 = vmatprep.subr.bf16.mxu0 0
  %225 = vmatpush1.bf16.msra.mxu0 %v203
  %226 = vmatprep.subr.bf16.mxu0 0
  %227 = vmatpush1.bf16.msra.mxu0 %v204
  %228 = vmatprep.subr.bf16.mxu0 0
  %229 = vmatpush1.bf16.msra.mxu0 %v205
  %230 = vmatprep.subr.bf16.mxu0 0
  %231 = vmatpush1.bf16.msra.mxu0 0
  %232 = vmatprep.subr.bf16.mxu0 0
  %233 = vmatpush1.bf16.msra.mxu0 0
  %234 = vmatprep.subr.bf16.mxu0 0
  %235 = vmatpush1.bf16.msra.mxu0 0
  %236 = vmatprep.subr.bf16.mxu0 0
  %237 = vmatpush1.bf16.msra.mxu0 0
  %238 = vmatprep.subr.bf16.mxu0 0
  %239 = vmatpush1.bf16.msra.mxu0 0
  %240 = vmatprep.subr.bf16.mxu0 0
  %241 = vmatpush1.bf16.msra.mxu0 0
  %242 = vmatprep.subr.bf16.mxu0 0
  %243 = vmatpush1.bf16.msra.mxu0 0
  %244 = vmatprep.subr.bf16.mxu0 0
  %245 = vmatpush1.bf16.msra.mxu0 0
  %246 = vmatprep.mubr.bf16.mxu0 0
  %247 = vmatmul.mubr.bf16.gmra.mrb[0].mxu0 %v134
  %v248 = vpop.f32.mrb[0].mxu0
  %v249 = vadd.f32 %v68, %v248
  %v250 = vpop.f32.mrb[0].mxu0
  %v251 = vpop.f32.mrb[0].mxu0
  %v252 = vadd.f32 %v68, %v251
  %v253 = vpop.f32.mrb[0].mxu0
  %254 = vmatprep.mubr.bf16.mxu0 0
  %255 = vmatmul.mubr.bf16.gmra.mrb[0].mxu0 %v135
  %v256 = vpop.f32.mrb[0].mxu0
  %v257 = vadd.f32 %v68, %v256
  %v258 = vpop.f32.mrb[0].mxu0
  %v259 = vpop.f32.mrb[0].mxu0
  %v260 = vadd.f32 %v68, %v259
  %v261 = vpop.f32.mrb[0].mxu0
  %262 = vmatprep.mubr.bf16.mxu0 0
  %263 = vmatmul.mubr.bf16.gmra.mrb[0].mxu0 %v136
  %v264 = vpop.f32.mrb[0].mxu0
  %v265 = vadd.f32 %v68, %v264
  %v266 = vpop.f32.mrb[0].mxu0
  %v267 = vpop.f32.mrb[0].mxu0
  %v268 = vadd.f32 %v68, %v267
  %v269 = vpop.f32.mrb[0].mxu0
  %270 = vmatprep.mubr.bf16.mxu0 0
  %271 = vmatmul.mubr.bf16.gmra.mrb[0].mxu0 %v137
  %v272 = vpop.f32.mrb[0].mxu0
  %v273 = vadd.f32 %v68, %v272
  %v274 = vpop.f32.mrb[0].mxu0
  %v275 = vpop.f32.mrb[0].mxu0
  %v276 = vadd.f32 %v68, %v275
  %v277 = vpop.f32.mrb[0].mxu0
  %278 = vmatprep.mubr.bf16.mxu0 0
  %279 = vmatmul.mubr.bf16.gmra.mrb[0].mxu0 %v138
  %v280 = vpop.f32.mrb[0].mxu0
  %v281 = vadd.f32 %v68, %v280
  %v282 = vpop.f32.mrb[0].mxu0
  %v283 = vpop.f32.mrb[0].mxu0
  %v284 = vadd.f32 %v68, %v283
  %v285 = vpop.f32.mrb[0].mxu0
  %286 = vmatprep.mubr.bf16.mxu0 0
  %287 = vmatmul.mubr.bf16.gmra.mrb[0].mxu0 %v139
  %v288 = vpop.f32.mrb[0].mxu0
  %v289 = vadd.f32 %v68, %v288
  %v290 = vpop.f32.mrb[0].mxu0
  %v291 = vpop.f32.mrb[0].mxu0
  %v292 = vadd.f32 %v68, %v291
  %v293 = vpop.f32.mrb[0].mxu0
  %294 = vmatprep.mubr.bf16.mxu0 0
  %295 = vmatmul.mubr.bf16.gmra.mrb[0].mxu0 %v140
  %v296 = vpop.f32.mrb[0].mxu0
  %v297 = vadd.f32 %v68, %v296
  %v298 = vpop.f32.mrb[0].mxu0
  %v299 = vpop.f32.mrb[0].mxu0
  %v300 = vadd.f32 %v68, %v299
  %v301 = vpop.f32.mrb[0].mxu0
  %302 = vmatprep.mubr.bf16.mxu0 0
  %303 = vmatmul.mubr.bf16.gmra.mrb[0].mxu0 %v141
  %v304 = vpop.f32.mrb[0].mxu0
  %v305 = vadd.f32 %v68, %v304
  %v306 = vpop.f32.mrb[0].mxu0
  %v307 = vpop.f32.mrb[0].mxu0
  %v308 = vadd.f32 %v68, %v307
  %v309 = vpop.f32.mrb[0].mxu0
  %310 = vmatprep.mubr.bf16.mxu0 0
  %311 = vmatmul.mubr.bf16.gmra.mrb[0].mxu0 %v142
  %v312 = vpop.f32.mrb[0].mxu0
  %v313 = vadd.f32 %v68, %v312
  %v314 = vpop.f32.mrb[0].mxu0
  %v315 = vpop.f32.mrb[0].mxu0
  %v316 = vadd.f32 %v68, %v315
  %v317 = vpop.f32.mrb[0].mxu0
  %318 = vmatprep.mubr.bf16.mxu0 0
  %319 = vmatmul.mubr.bf16.gmra.mrb[0].mxu0 %v143
  %v320 = vpop.f32.mrb[0].mxu0
  %v321 = vadd.f32 %v68, %v320
  %v322 = vpop.f32.mrb[0].mxu0
  %v323 = vpop.f32.mrb[0].mxu0
  %v324 = vadd.f32 %v68, %v323
  %v325 = vpop.f32.mrb[0].mxu0
  %326 = vmatprep.mubr.bf16.mxu0 0
  %327 = vmatmul.mubr.bf16.gmra.mrb[0].mxu0 %v144
  %v328 = vpop.f32.mrb[0].mxu0
  %v329 = vadd.f32 %v68, %v328
  %v330 = vpop.f32.mrb[0].mxu0
  %v331 = vpop.f32.mrb[0].mxu0
  %v332 = vadd.f32 %v68, %v331
  %v333 = vpop.f32.mrb[0].mxu0
  %334 = vmatprep.mubr.bf16.mxu0 0
  %335 = vmatmul.mubr.bf16.gmra.mrb[0].mxu0 %v145
  %v336 = vpop.f32.mrb[0].mxu0
  %v337 = vadd.f32 %v68, %v336
  %v338 = vpop.f32.mrb[0].mxu0
  %v339 = vpop.f32.mrb[0].mxu0
  %v340 = vadd.f32 %v68, %v339
  %v341 = vpop.f32.mrb[0].mxu0
  %342 = vmatprep.mubr.bf16.mxu0 0
  %343 = vmatmul.mubr.bf16.gmra.mrb[0].mxu0 %v146
  %v344 = vpop.f32.mrb[0].mxu0
  %v345 = vadd.f32 %v68, %v344
  %v346 = vpop.f32.mrb[0].mxu0
  %v347 = vpop.f32.mrb[0].mxu0
  %v348 = vadd.f32 %v68, %v347
  %v349 = vpop.f32.mrb[0].mxu0
  %350 = vmatprep.mubr.bf16.mxu0 0
  %351 = vmatmul.mubr.bf16.gmra.mrb[0].mxu0 %v147
  %v352 = vpop.f32.mrb[0].mxu0
  %v353 = vadd.f32 %v68, %v352
  %v354 = vpop.f32.mrb[0].mxu0
  %v355 = vpop.f32.mrb[0].mxu0
  %v356 = vadd.f32 %v68, %v355
  %v357 = vpop.f32.mrb[0].mxu0
  %358 = vmatprep.mubr.bf16.mxu0 0
  %359 = vmatmul.mubr.bf16.gmra.mrb[0].mxu0 %v148
  %v360 = vpop.f32.mrb[0].mxu0
  %v361 = vadd.f32 %v68, %v360
  %v362 = vpop.f32.mrb[0].mxu0
  %v363 = vpop.f32.mrb[0].mxu0
  %v364 = vadd.f32 %v68, %v363
  %v365 = vpop.f32.mrb[0].mxu0
  %366 = vmatprep.mubr.bf16.mxu0 0
  %367 = vmatmul.mubr.bf16.gmra.mrb[0].mxu0 %v149
  %v368 = vpop.f32.mrb[0].mxu0
  %v369 = vadd.f32 %v68, %v368
  %v370 = vpop.f32.mrb[0].mxu0
  %v371 = vpop.f32.mrb[0].mxu0
  %v372 = vadd.f32 %v68, %v371
  %v373 = vpop.f32.mrb[0].mxu0
  %374 = vdwg.mxu0
  %v375 = vtanh.pop %v249
  %v376 = vtanh.pop %v252
  %v377 = vtanh.pop %v257
  %v378 = vtanh.pop %v260
  %v379 = vtanh.pop %v265
  %v380 = vtanh.pop %v268
  %v381 = vtanh.pop %v273
  %v382 = vtanh.pop %v276
  %v383 = vtanh.pop %v281
  %v384 = vtanh.pop %v284
  %v385 = vtanh.pop %v289
  %v386 = vtanh.pop %v292
  %v387 = vtanh.pop %v297
  %v388 = vtanh.pop %v300
  %v389 = vtanh.pop %v305
  %v390 = vtanh.pop %v308
  %v391 = vtanh.pop %v313
  %v392 = vtanh.pop %v316
  %v393 = vtanh.pop %v321
  %v394 = vtanh.pop %v324
  %v395 = vtanh.pop %v329
  %v396 = vtanh.pop %v332
  %v397 = vtanh.pop %v337
  %v398 = vtanh.pop %v340
  %v399 = vtanh.pop %v345
  %v400 = vtanh.pop %v348
  %v401 = vtanh.pop %v353
  %v402 = vtanh.pop %v356
  %v403 = vtanh.pop %v361
  %v404 = vtanh.pop %v364
  %v405 = vtanh.pop %v369
  %v406 = vtanh.pop %v372
  %v407 = vpack.c.bf16 %v376, %v375
  %v408 = vpack.c.bf16 %v378, %v377
  %v409 = vpack.c.bf16 %v380, %v379
  %v410 = vpack.c.bf16 %v382, %v381
  %v411 = vpack.c.bf16 %v384, %v383
  %v412 = vpack.c.bf16 %v386, %v385
  %v413 = vpack.c.bf16 %v388, %v387
  %v414 = vpack.c.bf16 %v390, %v389
  %v415 = vpack.c.bf16 %v392, %v391
  %v416 = vpack.c.bf16 %v394, %v393
  %v417 = vpack.c.bf16 %v396, %v395
  %v418 = vpack.c.bf16 %v398, %v397
  %v419 = vpack.c.bf16 %v400, %v399
  %v420 = vpack.c.bf16 %v402, %v401
  %v421 = vpack.c.bf16 %v404, %v403
  %v422 = vpack.c.bf16 %v406, %v405
  %s423 = scalar_lea.vmem %s1, 64
  %v424 = vld [vmem:[%s423] sm:$0xf]
  %v425 = vld [vmem:[%s423 + $0x4] sm:$0xf]
  %v426 = vld [vmem:[%s423 + $0x8] sm:$0xf]
  %v427 = vld [vmem:[%s423 + $0xc] sm:$0xf]
  %v428 = vld [vmem:[%s423 + $0x10] sm:$0xf]
  %v429 = vld [vmem:[%s423 + $0x14] sm:$0xf]
  %v430 = vld [vmem:[%s423 + $0x18] sm:$0xf]
  %v431 = vld [vmem:[%s423 + $0x1c] sm:$0xf]
  %v432 = vld [vmem:[%s423 + $0x20] sm:$0xf]
  %v433 = vld [vmem:[%s423 + $0x24] sm:$0xf]
  %v434 = vld [vmem:[%s423 + $0x28] sm:$0xf]
  %v435 = vld [vmem:[%s423 + $0x2c] sm:$0xf]
  %v436 = vld [vmem:[%s423 + $0x30] sm:$0xf]
  %v437 = vld [vmem:[%s423 + $0x34] sm:$0xf]
  %v438 = vld [vmem:[%s423 + $0x38] sm:$0xf]
  %v439 = vld [vmem:[%s423 + $0x3c] sm:$0xf]
  %s440 = scalar_lea.vmem %s2, 1
  %v441 = vld [vmem:[%s440] sm:$0x1]
  %v443 = vlaneseq
  %v444 = vshrl.u32 %v443, 7
  %v445 = vsub.s32 0, %v444
  %v446 = vrot.slane %v441, %v445
  %v464 = vunpack.c.l.b16 %v424
  %v465 = vunpack.c.l.b16 %v425
  %v466 = vunpack.c.l.b16 %v426
  %v467 = vunpack.c.l.b16 %v427
  %v468 = vunpack.c.l.b16 %v428
  %v469 = vunpack.c.l.b16 %v429
  %v470 = vunpack.c.l.b16 %v430
  %v471 = vunpack.c.l.b16 %v431
  %v472 = vunpack.c.l.b16 %v432
  %v473 = vunpack.c.l.b16 %v433
  %v474 = vunpack.c.l.b16 %v434
  %v475 = vunpack.c.l.b16 %v435
  %v476 = vunpack.c.l.b16 %v436
  %v477 = vunpack.c.l.b16 %v437
  %v478 = vunpack.c.l.b16 %v438
  %v479 = vunpack.c.l.b16 %v439
  %v480 = vpack.c.b16 %v465, %v464
  %v481 = vpack.c.b16 %v467, %v466
  %v482 = vpack.c.b16 %v469, %v468
  %v483 = vpack.c.b16 %v471, %v470
  %v484 = vpack.c.b16 %v473, %v472
  %v485 = vpack.c.b16 %v475, %v474
  %v486 = vpack.c.b16 %v477, %v476
  %v487 = vpack.c.b16 %v479, %v478
  %496 = vmatprep.subr.bf16.mxu0 0
  %497 = vmatpush1.bf16.msra.mxu0 %v480
  %498 = vmatprep.subr.bf16.mxu0 0
  %499 = vmatpush1.bf16.msra.mxu0 %v481
  %500 = vmatprep.subr.bf16.mxu0 0
  %501 = vmatpush1.bf16.msra.mxu0 %v482
  %502 = vmatprep.subr.bf16.mxu0 0
  %503 = vmatpush1.bf16.msra.mxu0 %v483
  %504 = vmatprep.subr.bf16.mxu0 0
  %505 = vmatpush1.bf16.msra.mxu0 %v484
  %506 = vmatprep.subr.bf16.mxu0 0
  %507 = vmatpush1.bf16.msra.mxu0 %v485
  %508 = vmatprep.subr.bf16.mxu0 0
  %509 = vmatpush1.bf16.msra.mxu0 %v486
  %510 = vmatprep.subr.bf16.mxu0 0
  %511 = vmatpush1.bf16.msra.mxu0 %v487
  %512 = vmatprep.subr.bf16.mxu0 0
  %513 = vmatpush1.bf16.msra.mxu0 0
  %514 = vmatprep.subr.bf16.mxu0 0
  %515 = vmatpush1.bf16.msra.mxu0 0
  %516 = vmatprep.subr.bf16.mxu0 0
  %517 = vmatpush1.bf16.msra.mxu0 0
  %518 = vmatprep.subr.bf16.mxu0 0
  %519 = vmatpush1.bf16.msra.mxu0 0
  %520 = vmatprep.subr.bf16.mxu0 0
  %521 = vmatpush1.bf16.msra.mxu0 0
  %522 = vmatprep.subr.bf16.mxu0 0
  %523 = vmatpush1.bf16.msra.mxu0 0
  %524 = vmatprep.subr.bf16.mxu0 0
  %525 = vmatpush1.bf16.msra.mxu0 0
  %526 = vmatprep.subr.bf16.mxu0 0
  %527 = vmatpush1.bf16.msra.mxu0 0
  %528 = vmatprep.mubr.bf16.mxu0 0
  %529 = vmatmul.mubr.bf16.gmra.mrb[0].mxu0 %v407
  %v530 = vpop.f32.mrb[0].mxu0
  %v531 = vadd.f32 %v446, %v530
  %v532 = vpop.f32.mrb[0].mxu0
  %v533 = vpop.f32.mrb[0].mxu0
  %v534 = vadd.f32 %v446, %v533
  %v535 = vpop.f32.mrb[0].mxu0
  %536 = vmatprep.mubr.bf16.mxu0 0
  %537 = vmatmul.mubr.bf16.gmra.mrb[0].mxu0 %v408
  %v538 = vpop.f32.mrb[0].mxu0
  %v539 = vadd.f32 %v446, %v538
  %v540 = vpop.f32.mrb[0].mxu0
  %v541 = vpop.f32.mrb[0].mxu0
  %v542 = vadd.f32 %v446, %v541
  %v543 = vpop.f32.mrb[0].mxu0
  %544 = vmatprep.mubr.bf16.mxu0 0
  %545 = vmatmul.mubr.bf16.gmra.mrb[0].mxu0 %v409
  %v546 = vpop.f32.mrb[0].mxu0
  %v547 = vadd.f32 %v446, %v546
  %v548 = vpop.f32.mrb[0].mxu0
  %v549 = vpop.f32.mrb[0].mxu0
  %v550 = vadd.f32 %v446, %v549
  %v551 = vpop.f32.mrb[0].mxu0
  %552 = vmatprep.mubr.bf16.mxu0 0
  %553 = vmatmul.mubr.bf16.gmra.mrb[0].mxu0 %v410
  %v554 = vpop.f32.mrb[0].mxu0
  %v555 = vadd.f32 %v446, %v554
  %v556 = vpop.f32.mrb[0].mxu0
  %v557 = vpop.f32.mrb[0].mxu0
  %v558 = vadd.f32 %v446, %v557
  %v559 = vpop.f32.mrb[0].mxu0
  %560 = vmatprep.mubr.bf16.mxu0 0
  %561 = vmatmul.mubr.bf16.gmra.mrb[0].mxu0 %v411
  %v562 = vpop.f32.mrb[0].mxu0
  %v563 = vadd.f32 %v446, %v562
  %v564 = vpop.f32.mrb[0].mxu0
  %v565 = vpop.f32.mrb[0].mxu0
  %v566 = vadd.f32 %v446, %v565
  %v567 = vpop.f32.mrb[0].mxu0
  %568 = vmatprep.mubr.bf16.mxu0 0
  %569 = vmatmul.mubr.bf16.gmra.mrb[0].mxu0 %v412
  %v570 = vpop.f32.mrb[0].mxu0
  %v571 = vadd.f32 %v446, %v570
  %v572 = vpop.f32.mrb[0].mxu0
  %v573 = vpop.f32.mrb[0].mxu0
  %v574 = vadd.f32 %v446, %v573
  %v575 = vpop.f32.mrb[0].mxu0
  %576 = vmatprep.mubr.bf16.mxu0 0
  %577 = vmatmul.mubr.bf16.gmra.mrb[0].mxu0 %v413
  %v578 = vpop.f32.mrb[0].mxu0
  %v579 = vadd.f32 %v446, %v578
  %v580 = vpop.f32.mrb[0].mxu0
  %v581 = vpop.f32.mrb[0].mxu0
  %v582 = vadd.f32 %v446, %v581
  %v583 = vpop.f32.mrb[0].mxu0
  %584 = vmatprep.mubr.bf16.mxu0 0
  %585 = vmatmul.mubr.bf16.gmra.mrb[0].mxu0 %v414
  %v586 = vpop.f32.mrb[0].mxu0
  %v587 = vadd.f32 %v446, %v586
  %v588 = vpop.f32.mrb[0].mxu0
  %v589 = vpop.f32.mrb[0].mxu0
  %v590 = vadd.f32 %v446, %v589
  %v591 = vpop.f32.mrb[0].mxu0
  %592 = vmatprep.mubr.bf16.mxu0 0
  %593 = vmatmul.mubr.bf16.gmra.mrb[0].mxu0 %v415
  %v594 = vpop.f32.mrb[0].mxu0
  %v595 = vadd.f32 %v446, %v594
  %v596 = vpop.f32.mrb[0].mxu0
  %v597 = vpop.f32.mrb[0].mxu0
  %v598 = vadd.f32 %v446, %v597
  %v599 = vpop.f32.mrb[0].mxu0
  %600 = vmatprep.mubr.bf16.mxu0 0
  %601 = vmatmul.mubr.bf16.gmra.mrb[0].mxu0 %v416
  %v602 = vpop.f32.mrb[0].mxu0
  %v603 = vadd.f32 %v446, %v602
  %v604 = vpop.f32.mrb[0].mxu0
  %v605 = vpop.f32.mrb[0].mxu0
  %v606 = vadd.f32 %v446, %v605
  %v607 = vpop.f32.mrb[0].mxu0
  %608 = vmatprep.mubr.bf16.mxu0 0
  %609 = vmatmul.mubr.bf16.gmra.mrb[0].mxu0 %v417
  %v610 = vpop.f32.mrb[0].mxu0
  %v611 = vadd.f32 %v446, %v610
  %v612 = vpop.f32.mrb[0].mxu0
  %v613 = vpop.f32.mrb[0].mxu0
  %v614 = vadd.f32 %v446, %v613
  %v615 = vpop.f32.mrb[0].mxu0
  %616 = vmatprep.mubr.bf16.mxu0 0
  %617 = vmatmul.mubr.bf16.gmra.mrb[0].mxu0 %v418
  %v618 = vpop.f32.mrb[0].mxu0
  %v619 = vadd.f32 %v446, %v618
  %v620 = vpop.f32.mrb[0].mxu0
  %v621 = vpop.f32.mrb[0].mxu0
  %v622 = vadd.f32 %v446, %v621
  %v623 = vpop.f32.mrb[0].mxu0
  %624 = vmatprep.mubr.bf16.mxu0 0
  %625 = vmatmul.mubr.bf16.gmra.mrb[0].mxu0 %v419
  %v626 = vpop.f32.mrb[0].mxu0
  %v627 = vadd.f32 %v446, %v626
  %v628 = vpop.f32.mrb[0].mxu0
  %v629 = vpop.f32.mrb[0].mxu0
  %v630 = vadd.f32 %v446, %v629
  %v631 = vpop.f32.mrb[0].mxu0
  %632 = vmatprep.mubr.bf16.mxu0 0
  %633 = vmatmul.mubr.bf16.gmra.mrb[0].mxu0 %v420
  %v634 = vpop.f32.mrb[0].mxu0
  %v635 = vadd.f32 %v446, %v634
  %v636 = vpop.f32.mrb[0].mxu0
  %v637 = vpop.f32.mrb[0].mxu0
  %v638 = vadd.f32 %v446, %v637
  %v639 = vpop.f32.mrb[0].mxu0
  %640 = vmatprep.mubr.bf16.mxu0 0
  %641 = vmatmul.mubr.bf16.gmra.mrb[0].mxu0 %v421
  %v642 = vpop.f32.mrb[0].mxu0
  %v643 = vadd.f32 %v446, %v642
  %v644 = vpop.f32.mrb[0].mxu0
  %v645 = vpop.f32.mrb[0].mxu0
  %v646 = vadd.f32 %v446, %v645
  %v647 = vpop.f32.mrb[0].mxu0
  %648 = vmatprep.mubr.bf16.mxu0 0
  %649 = vmatmul.mubr.bf16.gmra.mrb[0].mxu0 %v422
  %v650 = vpop.f32.mrb[0].mxu0
  %v651 = vadd.f32 %v446, %v650
  %v652 = vpop.f32.mrb[0].mxu0
  %v653 = vpop.f32.mrb[0].mxu0
  %v654 = vadd.f32 %v446, %v653
  %v655 = vpop.f32.mrb[0].mxu0
  %656 = vdwg.mxu0
  %v657 = vtanh.pop %v531
  %v658 = vtanh.pop %v534
  %v659 = vtanh.pop %v539
  %v660 = vtanh.pop %v542
  %v661 = vtanh.pop %v547
  %v662 = vtanh.pop %v550
  %v663 = vtanh.pop %v555
  %v664 = vtanh.pop %v558
  %v665 = vtanh.pop %v563
  %v666 = vtanh.pop %v566
  %v667 = vtanh.pop %v571
  %v668 = vtanh.pop %v574
  %v669 = vtanh.pop %v579
  %v670 = vtanh.pop %v582
  %v671 = vtanh.pop %v587
  %v672 = vtanh.pop %v590
  %v673 = vtanh.pop %v595
  %v674 = vtanh.pop %v598
  %v675 = vtanh.pop %v603
  %v676 = vtanh.pop %v606
  %v677 = vtanh.pop %v611
  %v678 = vtanh.pop %v614
  %v679 = vtanh.pop %v619
  %v680 = vtanh.pop %v622
  %v681 = vtanh.pop %v627
  %v682 = vtanh.pop %v630
  %v683 = vtanh.pop %v635
  %v684 = vtanh.pop %v638
  %v685 = vtanh.pop %v643
  %v686 = vtanh.pop %v646
  %v687 = vtanh.pop %v651
  %v688 = vtanh.pop %v654
  %v689 = vpack.c.bf16 %v658, %v657
  %v690 = vpack.c.bf16 %v660, %v659
  %v691 = vpack.c.bf16 %v662, %v661
  %v692 = vpack.c.bf16 %v664, %v663
  %v693 = vpack.c.bf16 %v666, %v665
  %v694 = vpack.c.bf16 %v668, %v667
  %v695 = vpack.c.bf16 %v670, %v669
  %v696 = vpack.c.bf16 %v672, %v671
  %v697 = vpack.c.bf16 %v674, %v673
  %v698 = vpack.c.bf16 %v676, %v675
  %v699 = vpack.c.bf16 %v678, %v677
  %v700 = vpack.c.bf16 %v680, %v679
  %v701 = vpack.c.bf16 %v682, %v681
  %v702 = vpack.c.bf16 %v684, %v683
  %v703 = vpack.c.bf16 %v686, %v685
  %v704 = vpack.c.bf16 %v688, %v687
  %s705 = scalar_lea.vmem %s1, 128
  %v706 = vld [vmem:[%s705] sm:$0xf]
  %v707 = vld [vmem:[%s705 + $0x4] sm:$0xf]
  %v708 = vld [vmem:[%s705 + $0x8] sm:$0xf]
  %v709 = vld [vmem:[%s705 + $0xc] sm:$0xf]
  %v710 = vld [vmem:[%s705 + $0x10] sm:$0xf]
  %v711 = vld [vmem:[%s705 + $0x14] sm:$0xf]
  %v712 = vld [vmem:[%s705 + $0x18] sm:$0xf]
  %v713 = vld [vmem:[%s705 + $0x1c] sm:$0xf]
  %v714 = vld [vmem:[%s705 + $0x20] sm:$0xf]
  %v715 = vld [vmem:[%s705 + $0x24] sm:$0xf]
  %v716 = vld [vmem:[%s705 + $0x28] sm:$0xf]
  %v717 = vld [vmem:[%s705 + $0x2c] sm:$0xf]
  %v718 = vld [vmem:[%s705 + $0x30] sm:$0xf]
  %v719 = vld [vmem:[%s705 + $0x34] sm:$0xf]
  %v720 = vld [vmem:[%s705 + $0x38] sm:$0xf]
  %v721 = vld [vmem:[%s705 + $0x3c] sm:$0xf]
  %s722 = scalar_lea.vmem %s2, 2
  %v723 = vld [vmem:[%s722] sm:$0x1]
  %v725 = vlaneseq
  %v726 = vshrl.u32 %v725, 7
  %v727 = vsub.s32 0, %v726
  %v728 = vrot.slane %v723, %v727
  %v746 = vunpack.c.l.b16 %v706
  %v747 = vunpack.c.l.b16 %v707
  %v748 = vunpack.c.l.b16 %v708
  %v749 = vunpack.c.l.b16 %v709
  %v750 = vunpack.c.l.b16 %v710
  %v751 = vunpack.c.l.b16 %v711
  %v752 = vunpack.c.l.b16 %v712
  %v753 = vunpack.c.l.b16 %v713
  %v754 = vunpack.c.l.b16 %v714
  %v755 = vunpack.c.l.b16 %v715
  %v756 = vunpack.c.l.b16 %v716
  %v757 = vunpack.c.l.b16 %v717
  %v758 = vunpack.c.l.b16 %v718
  %v759 = vunpack.c.l.b16 %v719
  %v760 = vunpack.c.l.b16 %v720
  %v761 = vunpack.c.l.b16 %v721
  %v762 = vpack.c.b16 %v747, %v746
  %v763 = vpack.c.b16 %v749, %v748
  %v764 = vpack.c.b16 %v751, %v750
  %v765 = vpack.c.b16 %v753, %v752
  %v766 = vpack.c.b16 %v755, %v754
  %v767 = vpack.c.b16 %v757, %v756
  %v768 = vpack.c.b16 %v759, %v758
  %v769 = vpack.c.b16 %v761, %v760
  %778 = vmatprep.subr.bf16.mxu0 0
  %779 = vmatpush1.bf16.msra.mxu0 %v762
  %780 = vmatprep.subr.bf16.mxu0 0
  %781 = vmatpush1.bf16.msra.mxu0 %v763
  %782 = vmatprep.subr.bf16.mxu0 0
  %783 = vmatpush1.bf16.msra.mxu0 %v764
  %784 = vmatprep.subr.bf16.mxu0 0
  %785 = vmatpush1.bf16.msra.mxu0 %v765
  %786 = vmatprep.subr.bf16.mxu0 0
  %787 = vmatpush1.bf16.msra.mxu0 %v766
  %788 = vmatprep.subr.bf16.mxu0 0
  %789 = vmatpush1.bf16.msra.mxu0 %v767
  %790 = vmatprep.subr.bf16.mxu0 0
  %791 = vmatpush1.bf16.msra.mxu0 %v768
  %792 = vmatprep.subr.bf16.mxu0 0
  %793 = vmatpush1.bf16.msra.mxu0 %v769
  %794 = vmatprep.subr.bf16.mxu0 0
  %795 = vmatpush1.bf16.msra.mxu0 0
  %796 = vmatprep.subr.bf16.mxu0 0
  %797 = vmatpush1.bf16.msra.mxu0 0
  %798 = vmatprep.subr.bf16.mxu0 0
  %799 = vmatpush1.bf16.msra.mxu0 0
  %800 = vmatprep.subr.bf16.mxu0 0
  %801 = vmatpush1.bf16.msra.mxu0 0
  %802 = vmatprep.subr.bf16.mxu0 0
  %803 = vmatpush1.bf16.msra.mxu0 0
  %804 = vmatprep.subr.bf16.mxu0 0
  %805 = vmatpush1.bf16.msra.mxu0 0
  %806 = vmatprep.subr.bf16.mxu0 0
  %807 = vmatpush1.bf16.msra.mxu0 0
  %808 = vmatprep.subr.bf16.mxu0 0
  %809 = vmatpush1.bf16.msra.mxu0 0
  %810 = vmatprep.mubr.bf16.mxu0 0
  %811 = vmatmul.mubr.bf16.gmra.mrb[0].mxu0 %v689
  %v812 = vpop.f32.mrb[0].mxu0
  %v813 = vadd.f32 %v728, %v812
  %v814 = vpop.f32.mrb[0].mxu0
  %v815 = vpop.f32.mrb[0].mxu0
  %v816 = vadd.f32 %v728, %v815
  %v817 = vpop.f32.mrb[0].mxu0
  %818 = vmatprep.mubr.bf16.mxu0 0
  %819 = vmatmul.mubr.bf16.gmra.mrb[0].mxu0 %v690
  %v820 = vpop.f32.mrb[0].mxu0
  %v821 = vadd.f32 %v728, %v820
  %v822 = vpop.f32.mrb[0].mxu0
  %v823 = vpop.f32.mrb[0].mxu0
  %v824 = vadd.f32 %v728, %v823
  %v825 = vpop.f32.mrb[0].mxu0
  %826 = vmatprep.mubr.bf16.mxu0 0
  %827 = vmatmul.mubr.bf16.gmra.mrb[0].mxu0 %v691
  %v828 = vpop.f32.mrb[0].mxu0
  %v829 = vadd.f32 %v728, %v828
  %v830 = vpop.f32.mrb[0].mxu0
  %v831 = vpop.f32.mrb[0].mxu0
  %v832 = vadd.f32 %v728, %v831
  %v833 = vpop.f32.mrb[0].mxu0
  %834 = vmatprep.mubr.bf16.mxu0 0
  %835 = vmatmul.mubr.bf16.gmra.mrb[0].mxu0 %v692
  %v836 = vpop.f32.mrb[0].mxu0
  %v837 = vadd.f32 %v728, %v836
  %v838 = vpop.f32.mrb[0].mxu0
  %v839 = vpop.f32.mrb[0].mxu0
  %v840 = vadd.f32 %v728, %v839
  %v841 = vpop.f32.mrb[0].mxu0
  %842 = vmatprep.mubr.bf16.mxu0 0
  %843 = vmatmul.mubr.bf16.gmra.mrb[0].mxu0 %v693
  %v844 = vpop.f32.mrb[0].mxu0
  %v845 = vadd.f32 %v728, %v844
  %v846 = vpop.f32.mrb[0].mxu0
  %v847 = vpop.f32.mrb[0].mxu0
  %v848 = vadd.f32 %v728, %v847
  %v849 = vpop.f32.mrb[0].mxu0
  %850 = vmatprep.mubr.bf16.mxu0 0
  %851 = vmatmul.mubr.bf16.gmra.mrb[0].mxu0 %v694
  %v852 = vpop.f32.mrb[0].mxu0
  %v853 = vadd.f32 %v728, %v852
  %v854 = vpop.f32.mrb[0].mxu0
  %v855 = vpop.f32.mrb[0].mxu0
  %v856 = vadd.f32 %v728, %v855
  %v857 = vpop.f32.mrb[0].mxu0
  %858 = vmatprep.mubr.bf16.mxu0 0
  %859 = vmatmul.mubr.bf16.gmra.mrb[0].mxu0 %v695
  %v860 = vpop.f32.mrb[0].mxu0
  %v861 = vadd.f32 %v728, %v860
  %v862 = vpop.f32.mrb[0].mxu0
  %v863 = vpop.f32.mrb[0].mxu0
  %v864 = vadd.f32 %v728, %v863
  %v865 = vpop.f32.mrb[0].mxu0
  %866 = vmatprep.mubr.bf16.mxu0 0
  %867 = vmatmul.mubr.bf16.gmra.mrb[0].mxu0 %v696
  %v868 = vpop.f32.mrb[0].mxu0
  %v869 = vadd.f32 %v728, %v868
  %v870 = vpop.f32.mrb[0].mxu0
  %v871 = vpop.f32.mrb[0].mxu0
  %v872 = vadd.f32 %v728, %v871
  %v873 = vpop.f32.mrb[0].mxu0
  %874 = vmatprep.mubr.bf16.mxu0 0
  %875 = vmatmul.mubr.bf16.gmra.mrb[0].mxu0 %v697
  %v876 = vpop.f32.mrb[0].mxu0
  %v877 = vadd.f32 %v728, %v876
  %v878 = vpop.f32.mrb[0].mxu0
  %v879 = vpop.f32.mrb[0].mxu0
  %v880 = vadd.f32 %v728, %v879
  %v881 = vpop.f32.mrb[0].mxu0
  %882 = vmatprep.mubr.bf16.mxu0 0
  %883 = vmatmul.mubr.bf16.gmra.mrb[0].mxu0 %v698
  %v884 = vpop.f32.mrb[0].mxu0
  %v885 = vadd.f32 %v728, %v884
  %v886 = vpop.f32.mrb[0].mxu0
  %v887 = vpop.f32.mrb[0].mxu0
  %v888 = vadd.f32 %v728, %v887
  %v889 = vpop.f32.mrb[0].mxu0
  %890 = vmatprep.mubr.bf16.mxu0 0
  %891 = vmatmul.mubr.bf16.gmra.mrb[0].mxu0 %v699
  %v892 = vpop.f32.mrb[0].mxu0
  %v893 = vadd.f32 %v728, %v892
  %v894 = vpop.f32.mrb[0].mxu0
  %v895 = vpop.f32.mrb[0].mxu0
  %v896 = vadd.f32 %v728, %v895
  %v897 = vpop.f32.mrb[0].mxu0
  %898 = vmatprep.mubr.bf16.mxu0 0
  %899 = vmatmul.mubr.bf16.gmra.mrb[0].mxu0 %v700
  %v900 = vpop.f32.mrb[0].mxu0
  %v901 = vadd.f32 %v728, %v900
  %v902 = vpop.f32.mrb[0].mxu0
  %v903 = vpop.f32.mrb[0].mxu0
  %v904 = vadd.f32 %v728, %v903
  %v905 = vpop.f32.mrb[0].mxu0
  %906 = vmatprep.mubr.bf16.mxu0 0
  %907 = vmatmul.mubr.bf16.gmra.mrb[0].mxu0 %v701
  %v908 = vpop.f32.mrb[0].mxu0
  %v909 = vadd.f32 %v728, %v908
  %v910 = vpop.f32.mrb[0].mxu0
  %v911 = vpop.f32.mrb[0].mxu0
  %v912 = vadd.f32 %v728, %v911
  %v913 = vpop.f32.mrb[0].mxu0
  %914 = vmatprep.mubr.bf16.mxu0 0
  %915 = vmatmul.mubr.bf16.gmra.mrb[0].mxu0 %v702
  %v916 = vpop.f32.mrb[0].mxu0
  %v917 = vadd.f32 %v728, %v916
  %v918 = vpop.f32.mrb[0].mxu0
  %v919 = vpop.f32.mrb[0].mxu0
  %v920 = vadd.f32 %v728, %v919
  %v921 = vpop.f32.mrb[0].mxu0
  %922 = vmatprep.mubr.bf16.mxu0 0
  %923 = vmatmul.mubr.bf16.gmra.mrb[0].mxu0 %v703
  %v924 = vpop.f32.mrb[0].mxu0
  %v925 = vadd.f32 %v728, %v924
  %v926 = vpop.f32.mrb[0].mxu0
  %v927 = vpop.f32.mrb[0].mxu0
  %v928 = vadd.f32 %v728, %v927
  %v929 = vpop.f32.mrb[0].mxu0
  %930 = vmatprep.mubr.bf16.mxu0 0
  %931 = vmatmul.mubr.bf16.gmra.mrb[0].mxu0 %v704
  %v932 = vpop.f32.mrb[0].mxu0
  %v933 = vadd.f32 %v728, %v932
  %v934 = vpop.f32.mrb[0].mxu0
  %v935 = vpop.f32.mrb[0].mxu0
  %v936 = vadd.f32 %v728, %v935
  %v937 = vpop.f32.mrb[0].mxu0
  %938 = vdwg.mxu0
  %939 = vst [vmem:[%s3] sm:$0xff] %v813
  %940 = vst [vmem:[%s3 + $0x8] sm:$0xff] %v816
  %941 = vst [vmem:[%s3 + $0x10] sm:$0xff] %v821
  %942 = vst [vmem:[%s3 + $0x18] sm:$0xff] %v824
  %943 = vst [vmem:[%s3 + $0x20] sm:$0xff] %v829
  %944 = vst [vmem:[%s3 + $0x28] sm:$0xff] %v832
  %945 = vst [vmem:[%s3 + $0x30] sm:$0xff] %v837
  %946 = vst [vmem:[%s3 + $0x38] sm:$0xff] %v840
  %947 = vst [vmem:[%s3 + $0x40] sm:$0xff] %v845
  %948 = vst [vmem:[%s3 + $0x48] sm:$0xff] %v848
  %949 = vst [vmem:[%s3 + $0x50] sm:$0xff] %v853
  %950 = vst [vmem:[%s3 + $0x58] sm:$0xff] %v856
  %951 = vst [vmem:[%s3 + $0x60] sm:$0xff] %v861
  %952 = vst [vmem:[%s3 + $0x68] sm:$0xff] %v864
  %953 = vst [vmem:[%s3 + $0x70] sm:$0xff] %v869
  %954 = vst [vmem:[%s3 + $0x78] sm:$0xff] %v872
  %955 = vst [vmem:[%s3 + $0x80] sm:$0xff] %v877
  %956 = vst [vmem:[%s3 + $0x88] sm:$0xff] %v880
  %957 = vst [vmem:[%s3 + $0x90] sm:$0xff] %v885
  %958 = vst [vmem:[%s3 + $0x98] sm:$0xff] %v888
  %959 = vst [vmem:[%s3 + $0xa0] sm:$0xff] %v893
  %960 = vst [vmem:[%s3 + $0xa8] sm:$0xff] %v896
  %961 = vst [vmem:[%s3 + $0xb0] sm:$0xff] %v901
  %962 = vst [vmem:[%s3 + $0xb8] sm:$0xff] %v904
  %963 = vst [vmem:[%s3 + $0xc0] sm:$0xff] %v909
  %964 = vst [vmem:[%s3 + $0xc8] sm:$0xff] %v912
  %965 = vst [vmem:[%s3 + $0xd0] sm:$0xff] %v917
  %966 = vst [vmem:[%s3 + $0xd8] sm:$0xff] %v920
  %967 = vst [vmem:[%s3 + $0xe0] sm:$0xff] %v925
  %968 = vst [vmem:[%s3 + $0xe8] sm:$0xff] %v928
  %969 = vst [vmem:[%s3 + $0xf0] sm:$0xff] %v933
  %970 = vst [vmem:[%s3 + $0xf8] sm:$0xff] %v936
  // Predicated region
  $region14: #{_mlp_forward_padded.1} parent=0 // pred_check
    _
  $region15: #{_mlp_forward_padded.1} parent=0 // pred_check_branch
    %972 = sbr.rel (0) target = $region17
  $region16: #{_mlp_forward_padded.1} parent=0 // pred_region
    _
  $region17: #{_mlp_forward_padded.1} parent=0 // pred_fallthru
    _
  // Predicated region
  $region18: #{_mlp_forward_padded.1} parent=0 // pred_check
    _
  $region19: #{_mlp_forward_padded.1} parent=0 // pred_check_branch
    %974 = sbr.rel (0) target = $region21
  $region20: #{_mlp_forward_padded.1} parent=0 // pred_region
    _
  $region21: #{_mlp_forward_padded.1} parent=0 // pred_fallthru
    _

</llo_original>
